<compile_context>
chip_gen: v5e
topology: v5e:2x2
jax: 0.10.0
libtpu: 0.0.40
codegen_flags: <defaults>
</compile_context>

<pallas_src>
import jax
import jax.numpy as jnp
import numpy as np
from jax.experimental import pallas as pl
from jax.experimental.pallas import tpu as pltpu

# ---------------------------------------------------------------------------
# problem sizes (small, consistent with the module)
# ---------------------------------------------------------------------------
B = 2          # batch
S = 8          # decoder sequence length
S_ENC = 8      # encoder sequence length (K/V)
E = 32         # size_emb
H = 4          # n_heads
HD = E // H    # head dim
EXP = 4        # expansion
HIDDEN = EXP * E
LN_EPS = 1e-5

BS = B * S
BSE = B * S_ENC
NEG = -1e20    # additive mask value


# ---------------------------------------------------------------------------
# fused Pallas kernel (single grid step, whole batch resident in VMEM)
# ---------------------------------------------------------------------------
def _decoder_block_kernel(
    x_ref, kv_ref, masks_ref,
    w_qkv_s_ref, w_o_s_ref, w_q_c_ref, w_kv_c_ref, w_o_c_ref,
    w_ff1_ref, w_ff2_ref, vecs_ref, b_ff1_ref,
    out_ref,
):
    f32 = jnp.float32
    bf16 = jnp.bfloat16

    x = x_ref[...]                       # (BS, E) f32  (batch folded into rows)
    x16 = x.astype(bf16)
    kv16 = kv_ref[...]                   # (BSE, 2E) bf16  [K_enc | V_enc]
    masks = masks_ref[...]               # (BS, BS + BSE) additive f32
    m_self = masks[:, :BS]               # (BS, BS)   causal + batch-block-diag
    m_cross = masks[:, BS:]              # (BS, BSE)  pad    + batch-block-diag

    vecs = vecs_ref[...]                 # (9, E) f32 packed small params
    bo_s, g_ln, b_ln = vecs[0:1], vecs[1:2], vecs[2:3]
    bo_c, g_n1, b_n1 = vecs[3:4], vecs[4:5], vecs[5:6]
    b_ff2, g_n2, b_n2 = vecs[6:7], vecs[7:8], vecs[8:9]

    def layer_norm(y, gamma, beta):
        mu = jnp.mean(y, axis=-1, keepdims=True)
        var = jnp.mean((y - mu) ** 2, axis=-1, keepdims=True)
        return (y - mu) * jax.lax.rsqrt(var + LN_EPS) * gamma + beta

    def softmax_rows(scores):            # scores f32, already masked (additive)
        m = jnp.max(scores, axis=-1, keepdims=True)
        p = jnp.exp(scores - m)
        l = jnp.sum(p, axis=-1, keepdims=True)
        return p * pl.reciprocal(l, approx=True)

    def heads_attention(q_proj, k_proj, v_proj, add_mask):
        """Per-head scores / softmax / value mix on already-projected Q/K/V."""
        outs = []
        for h in range(H):
            sl = slice(h * HD, (h + 1) * HD)
            qh = q_proj[:, sl].astype(bf16)
            kh = k_proj[:, sl].astype(bf16)
            vh = v_proj[:, sl].astype(bf16)
            s = jax.lax.dot_general(          # qh @ kh.T
                qh, kh, (((1,), (1,)), ((), ())),
                preferred_element_type=f32)
            p = softmax_rows(s + add_mask)
            outs.append(jnp.dot(p.astype(bf16), vh, preferred_element_type=f32))
        return jnp.concatenate(outs, axis=-1)   # (rows_q, E) f32

    # ---- decoder self-attention (fused QKV projection, scale folded in Wq)
    qkv = jnp.dot(x16, w_qkv_s_ref[...], preferred_element_type=f32)   # (BS, 3E)
    heads_s = heads_attention(qkv[:, :E], qkv[:, E:2 * E], qkv[:, 2 * E:], m_self)
    attn = jnp.dot(heads_s.astype(bf16), w_o_s_ref[...],
                   preferred_element_type=f32) + bo_s
    # TODO(synk): Dropout = identity (eval mode).
    q = layer_norm(attn + x, g_ln, b_ln)

    # ---- EncoderBlock: cross-attention with encoder K / V
    qc = jnp.dot(q.astype(bf16), w_q_c_ref[...], preferred_element_type=f32)
    kvp = jnp.dot(kv16, w_kv_c_ref[...], preferred_element_type=f32)   # (BSE, 2E)
    heads_c = heads_attention(qc, kvp[:, :E], kvp[:, E:], m_cross)
    cross = jnp.dot(heads_c.astype(bf16), w_o_c_ref[...],
                    preferred_element_type=f32) + bo_c
    x1 = layer_norm(cross + q, g_n1, b_n1)

    # ---- feed-forward: Linear -> ReLU -> Linear
    h1 = jnp.dot(x1.astype(bf16), w_ff1_ref[...],
                 preferred_element_type=f32) + b_ff1_ref[...]
    h1 = jnp.maximum(h1, 0.0)
    ff = jnp.dot(h1.astype(bf16), w_ff2_ref[...],
                 preferred_element_type=f32) + b_ff2

    out_ref[...] = layer_norm(ff + x1, g_n2, b_n2).astype(out_ref.dtype)


# ---------------------------------------------------------------------------
# wrapper-side packing (layout plumbing only — one-time cheap XLA ops)
# ---------------------------------------------------------------------------
def _kron_heads(w_hd):
    """Shared (HD,HD) head weight -> block-diagonal (E,E) all-heads weight."""
    return jnp.kron(jnp.eye(H, dtype=w_hd.dtype), w_hd)


def _additive_batch_mask(mask):
    """(B,Sq,Sk) 0/1 mask -> (B*Sq, B*Sk) additive mask; cross-batch blocked."""
    b, sq, sk = mask.shape
    same_batch = jnp.eye(b, dtype=mask.dtype)[:, None, :, None]          # (B,1,B,1)
    keep = (same_batch * mask[:, :, None, :]).reshape(b * sq, b * sk)
    return jnp.where(keep == 0, NEG, 0.0).astype(jnp.float32)


def _pack_operands(x, K, V, diag_mask, pad_mask, p):
    scale = jnp.float32(1.0 / np.sqrt(E))

    wq_s = _kron_heads(p["wq_s"]) * scale          # fold 1/sqrt(E) into Wq
    wk_s = _kron_heads(p["wk_s"])
    wv_s = _kron_heads(p["wv_s"])
    w_qkv_s = jnp.concatenate([wq_s, wk_s, wv_s], axis=1).astype(jnp.bfloat16)

    w_q_c = (_kron_heads(p["wq_c"]) * scale).astype(jnp.bfloat16)
    wk_c = _kron_heads(p["wk_c"])
    wv_c = _kron_heads(p["wv_c"])
    w_kv_c = jnp.zeros((2 * E, 2 * E), jnp.float32)
    w_kv_c = w_kv_c.at[:E, :E].set(wk_c).at[E:, E:].set(wv_c).astype(jnp.bfloat16)

    w_o_s = p["wo_s"].astype(jnp.bfloat16)
    w_o_c = p["wo_c"].astype(jnp.bfloat16)
    w_ff1 = p["w_ff1"].astype(jnp.bfloat16)
    w_ff2 = p["w_ff2"].astype(jnp.bfloat16)

    vecs = jnp.concatenate(
        [p["bo_s"], p["g_ln"], p["b_ln"],
         p["bo_c"], p["g_n1"], p["b_n1"],
         p["b_ff2"], p["g_n2"], p["b_n2"]], axis=0).astype(jnp.float32)   # (9, E)
    b_ff1 = p["b_ff1"].astype(jnp.float32)                                # (1, HIDDEN)

    x2d = x.reshape(BS, E).astype(jnp.float32)
    kv = jnp.concatenate([K.reshape(BSE, E), V.reshape(BSE, E)],
                         axis=-1).astype(jnp.bfloat16)                    # (BSE, 2E)
    masks = jnp.concatenate([_additive_batch_mask(diag_mask),
                             _additive_batch_mask(pad_mask)], axis=-1)    # (BS, BS+BSE)

    return (x2d, kv, masks, w_qkv_s, w_o_s, w_q_c, w_kv_c, w_o_c,
            w_ff1, w_ff2, vecs, b_ff1)


@jax.jit
def decoder_block(x, K, V, diag_mask, pad_mask, params):
    args = _pack_operands(x, K, V, diag_mask, pad_mask, params)

    def zero_map(nd):
        return lambda i, _nd=nd: (0,) * _nd

    out2d = pl.pallas_call(
        _decoder_block_kernel,
        out_shape=jax.ShapeDtypeStruct((BS, E), jnp.float32),
        grid=(1,),
        in_specs=[pl.BlockSpec(a.shape, zero_map(a.ndim)) for a in args],
        out_specs=pl.BlockSpec((BS, E), zero_map(2)),
        compiler_params=pltpu.CompilerParams(
            dimension_semantics=("arbitrary",)),
    )(*args)
    return out2d.reshape(B, S, E)


# ---------------------------------------------------------------------------
# pure-JAX f32 reference (same math, batched with einsum) for correctness
# ---------------------------------------------------------------------------
def reference(x, K, V, dmask, pmask, p):
    def ln(y, g, bb):
        mu = y.mean(-1, keepdims=True)
        var = ((y - mu) ** 2).mean(-1, keepdims=True)
        return (y - mu) / jnp.sqrt(var + LN_EPS) * g[0] + bb[0]

    def mha(qin, kin, vin, mask, wq, wk, wv, wo, bo):
        bsz, sq, _ = qin.shape
        sk = kin.shape[1]
        qh = jnp.einsum("bshd,de->bshe", qin.reshape(bsz, sq, H, HD), wq)
        kh = jnp.einsum("bshd,de->bshe", kin.reshape(bsz, sk, H, HD), wk)
        vh = jnp.einsum("bshd,de->bshe", vin.reshape(bsz, sk, H, HD), wv)
        en = jnp.einsum("bqhd,bkhd->bhqk", qh, kh) / np.sqrt(E)
        en = jnp.where(mask[:, None, :, :] == 0, -1e20, en)
        at = jax.nn.softmax(en, axis=-1)
        o = jnp.einsum("bhqk,bkhd->bqhd", at, vh).reshape(bsz, sq, E)
        return o @ wo + bo[0]

    attn = mha(x, x, x, dmask, p["wq_s"], p["wk_s"], p["wv_s"], p["wo_s"], p["bo_s"])
    q = ln(attn + x, p["g_ln"], p["b_ln"])
    cross = mha(q, K, V, pmask, p["wq_c"], p["wk_c"], p["wv_c"], p["wo_c"], p["bo_c"])
    x1 = ln(cross + q, p["g_n1"], p["b_n1"])
    ff = jnp.maximum(x1 @ p["w_ff1"] + p["b_ff1"][0], 0.0) @ p["w_ff2"] + p["b_ff2"][0]
    return ln(ff + x1, p["g_n2"], p["b_n2"])


# ---------------------------------------------------------------------------
# deterministic parameter / input construction
# ---------------------------------------------------------------------------
def make_params(key):
    ks = iter(jax.random.split(key, 32))

    def w(fan_in, fan_out):          # stored as (in, out) == nn.Linear weight .T
        return jax.random.normal(next(ks), (fan_in, fan_out), jnp.float32) * 0.1

    def bias(dim):
        return jax.random.normal(next(ks), (1, dim), jnp.float32) * 0.05

    return {
        # decoder self-attention
        "wq_s": w(HD, HD), "wk_s": w(HD, HD), "wv_s": w(HD, HD),
        "wo_s": w(E, E), "bo_s": bias(E),
        # decoder LayerNorm
        "g_ln": jnp.ones((1, E), jnp.float32), "b_ln": jnp.zeros((1, E), jnp.float32),
        # encoder-block cross-attention
        "wq_c": w(HD, HD), "wk_c": w(HD, HD), "wv_c": w(HD, HD),
        "wo_c": w(E, E), "bo_c": bias(E),
        # encoder-block norm1 / feed-forward / norm2
        "g_n1": jnp.ones((1, E), jnp.float32), "b_n1": jnp.zeros((1, E), jnp.float32),
        "w_ff1": w(E, HIDDEN), "b_ff1": bias(HIDDEN),
        "w_ff2": w(HIDDEN, E), "b_ff2": bias(E),
        "g_n2": jnp.ones((1, E), jnp.float32), "b_n2": jnp.zeros((1, E), jnp.float32),
    }


if __name__ == "__main__":
    root = jax.random.PRNGKey(0)
    k_x, k_k, k_v, k_p = jax.random.split(root, 4)

    x = jax.random.normal(k_x, (B, S, E), jnp.float32)
    K = jax.random.normal(k_k, (B, S_ENC, E), jnp.float32)
    V = jax.random.normal(k_v, (B, S_ENC, E), jnp.float32)

    # causal (diag) mask for decoder self-attention: 1 = keep, 0 = masked
    diag_mask = jnp.broadcast_to(
        jnp.tril(jnp.ones((S, S), jnp.float32)), (B, S, S))
    # pad mask for cross-attention; mask out last 2 encoder positions of batch 1
    pad_mask = jnp.ones((B, S, S_ENC), jnp.float32)
    pad_mask = pad_mask.at[1, :, S_ENC - 2:].set(0.0)

    params = make_params(k_p)

    out = jax.block_until_ready(decoder_block(x, K, V, diag_mask, pad_mask, params))
    ref = jax.block_until_ready(reference(x, K, V, diag_mask, pad_mask, params))

    err = float(jnp.max(jnp.abs(out - ref)))
    assert out.shape == (B, S, E), out.shape
    # bf16 MXU operands + approximate softmax reciprocal vs. full-f32 reference
    assert err < 5e-2, f"mismatch vs reference: {err}"

    print("KERNEL_OK")
</pallas_src>

<mosaic_0001>
module attributes {stable_mosaic.version = 11 : i64} {
  func.func @_decoder_block_kernel(%arg0: i32, %arg1: memref<16x32xf32, #tpu.memory_space<vmem>>, %arg2: memref<16x64xbf16, #tpu.memory_space<vmem>>, %arg3: memref<16x32xf32, #tpu.memory_space<vmem>>, %arg4: memref<32x96xbf16, #tpu.memory_space<vmem>>, %arg5: memref<32x32xbf16, #tpu.memory_space<vmem>>, %arg6: memref<32x32xbf16, #tpu.memory_space<vmem>>, %arg7: memref<64x64xbf16, #tpu.memory_space<vmem>>, %arg8: memref<32x32xbf16, #tpu.memory_space<vmem>>, %arg9: memref<32x128xbf16, #tpu.memory_space<vmem>>, %arg10: memref<128x32xbf16, #tpu.memory_space<vmem>>, %arg11: memref<9x32xf32, #tpu.memory_space<vmem>>, %arg12: memref<1x128xf32, #tpu.memory_space<vmem>>, %arg13: memref<16x32xf32, #tpu.memory_space<vmem>>) attributes {dimension_semantics = [#tpu.dimension_semantics<arbitrary>], iteration_bounds = array<i64: 1>, scalar_prefetch = 0 : i64, scratch_operands = 0 : i64, tpu.core_type = #tpu.core_type<tc>, window_params = [{pipeline_mode = #tpu.pipeline_mode<synchronous>, transform_indices = @transform_0, window_bounds = array<i64: 16, 32>}, {pipeline_mode = #tpu.pipeline_mode<synchronous>, transform_indices = @transform_1, window_bounds = array<i64: 16, 64>}, {pipeline_mode = #tpu.pipeline_mode<synchronous>, transform_indices = @transform_2, window_bounds = array<i64: 16, 32>}, {pipeline_mode = #tpu.pipeline_mode<synchronous>, transform_indices = @transform_3, window_bounds = array<i64: 32, 96>}, {pipeline_mode = #tpu.pipeline_mode<synchronous>, transform_indices = @transform_4, window_bounds = array<i64: 32, 32>}, {pipeline_mode = #tpu.pipeline_mode<synchronous>, transform_indices = @transform_5, window_bounds = array<i64: 32, 32>}, {pipeline_mode = #tpu.pipeline_mode<synchronous>, transform_indices = @transform_6, window_bounds = array<i64: 64, 64>}, {pipeline_mode = #tpu.pipeline_mode<synchronous>, transform_indices = @transform_7, window_bounds = array<i64: 32, 32>}, {pipeline_mode = #tpu.pipeline_mode<synchronous>, transform_indices = @transform_8, window_bounds = array<i64: 32, 128>}, {pipeline_mode = #tpu.pipeline_mode<synchronous>, transform_indices = @transform_9, window_bounds = array<i64: 128, 32>}, {pipeline_mode = #tpu.pipeline_mode<synchronous>, transform_indices = @transform_10, window_bounds = array<i64: 9, 32>}, {pipeline_mode = #tpu.pipeline_mode<synchronous>, transform_indices = @transform_11, window_bounds = array<i64: 1, 128>}, {pipeline_mode = #tpu.pipeline_mode<synchronous>, transform_indices = @transform_12, window_bounds = array<i64: 16, 32>}]} {
    %c0 = arith.constant 0 : index
    %c0_0 = arith.constant 0 : index
    %0 = vector.load %arg1[%c0, %c0_0] : memref<16x32xf32, #tpu.memory_space<vmem>>, vector<16x32xf32>
    %1 = arith.truncf %0 : vector<16x32xf32> to vector<16x32xbf16>
    %c0_1 = arith.constant 0 : index
    %c0_2 = arith.constant 0 : index
    %2 = vector.load %arg2[%c0_1, %c0_2] : memref<16x64xbf16, #tpu.memory_space<vmem>>, vector<16x64xbf16>
    %c0_3 = arith.constant 0 : index
    %c0_4 = arith.constant 0 : index
    %3 = vector.load %arg3[%c0_3, %c0_4] : memref<16x32xf32, #tpu.memory_space<vmem>>, vector<16x32xf32>
    %4 = vector.extract_strided_slice %3 {offsets = [0, 0], sizes = [16, 16], strides = [1, 1]} : vector<16x32xf32> to vector<16x16xf32>
    %5 = vector.extract_strided_slice %3 {offsets = [0, 16], sizes = [16, 16], strides = [1, 1]} : vector<16x32xf32> to vector<16x16xf32>
    %c0_5 = arith.constant 0 : index
    %c0_6 = arith.constant 0 : index
    %6 = vector.load %arg11[%c0_5, %c0_6] : memref<9x32xf32, #tpu.memory_space<vmem>>, vector<9x32xf32>
    %7 = vector.extract_strided_slice %6 {offsets = [0, 0], sizes = [1, 32], strides = [1, 1]} : vector<9x32xf32> to vector<1x32xf32>
    %8 = vector.extract_strided_slice %6 {offsets = [1, 0], sizes = [1, 32], strides = [1, 1]} : vector<9x32xf32> to vector<1x32xf32>
    %9 = vector.extract_strided_slice %6 {offsets = [2, 0], sizes = [1, 32], strides = [1, 1]} : vector<9x32xf32> to vector<1x32xf32>
    %10 = vector.extract_strided_slice %6 {offsets = [3, 0], sizes = [1, 32], strides = [1, 1]} : vector<9x32xf32> to vector<1x32xf32>
    %11 = vector.extract_strided_slice %6 {offsets = [4, 0], sizes = [1, 32], strides = [1, 1]} : vector<9x32xf32> to vector<1x32xf32>
    %12 = vector.extract_strided_slice %6 {offsets = [5, 0], sizes = [1, 32], strides = [1, 1]} : vector<9x32xf32> to vector<1x32xf32>
    %13 = vector.extract_strided_slice %6 {offsets = [6, 0], sizes = [1, 32], strides = [1, 1]} : vector<9x32xf32> to vector<1x32xf32>
    %14 = vector.extract_strided_slice %6 {offsets = [7, 0], sizes = [1, 32], strides = [1, 1]} : vector<9x32xf32> to vector<1x32xf32>
    %15 = vector.extract_strided_slice %6 {offsets = [8, 0], sizes = [1, 32], strides = [1, 1]} : vector<9x32xf32> to vector<1x32xf32>
    %c0_7 = arith.constant 0 : index
    %c0_8 = arith.constant 0 : index
    %16 = vector.load %arg4[%c0_7, %c0_8] : memref<32x96xbf16, #tpu.memory_space<vmem>>, vector<32x96xbf16>
    %cst = arith.constant dense<0.000000e+00> : vector<16x96xf32>
    %17 = tpu.matmul %1, %16, %cst {dimension_numbers = #tpu.dot_dimension_numbers<[1], [0], [0], [1], [0, 0, 1, 1], [], []>} : vector<16x32xbf16>, vector<32x96xbf16>, vector<16x96xf32> -> vector<16x96xf32>
    %18 = vector.extract_strided_slice %17 {offsets = [0, 0], sizes = [16, 32], strides = [1, 1]} : vector<16x96xf32> to vector<16x32xf32>
    %19 = vector.extract_strided_slice %17 {offsets = [0, 32], sizes = [16, 32], strides = [1, 1]} : vector<16x96xf32> to vector<16x32xf32>
    %20 = vector.extract_strided_slice %17 {offsets = [0, 64], sizes = [16, 32], strides = [1, 1]} : vector<16x96xf32> to vector<16x32xf32>
    %21 = vector.extract_strided_slice %18 {offsets = [0, 0], sizes = [16, 8], strides = [1, 1]} : vector<16x32xf32> to vector<16x8xf32>
    %22 = arith.truncf %21 : vector<16x8xf32> to vector<16x8xbf16>
    %23 = vector.extract_strided_slice %19 {offsets = [0, 0], sizes = [16, 8], strides = [1, 1]} : vector<16x32xf32> to vector<16x8xf32>
    %24 = arith.truncf %23 : vector<16x8xf32> to vector<16x8xbf16>
    %25 = vector.extract_strided_slice %20 {offsets = [0, 0], sizes = [16, 8], strides = [1, 1]} : vector<16x32xf32> to vector<16x8xf32>
    %26 = arith.truncf %25 : vector<16x8xf32> to vector<16x8xbf16>
    %cst_9 = arith.constant dense<0.000000e+00> : vector<16x16xf32>
    %27 = tpu.matmul %22, %24, %cst_9 {dimension_numbers = #tpu.dot_dimension_numbers<[1], [1], [0], [0], [0, 0, 1, 0], [], []>} : vector<16x8xbf16>, vector<16x8xbf16>, vector<16x16xf32> -> vector<16x16xf32>
    %28 = arith.addf %27, %4 : vector<16x16xf32>
    %cst_10 = arith.constant dense<0xFF800000> : vector<16xf32>
    %29 = vector.multi_reduction <maximumf>, %28, %cst_10 [1] : vector<16x16xf32> to vector<16xf32>
    %30 = vector.shape_cast %29 : vector<16xf32> to vector<16x1xf32>
    %31 = vector.broadcast %30 : vector<16x1xf32> to vector<16x16xf32>
    %32 = arith.subf %28, %31 : vector<16x16xf32>
    %33 = math.exp %32 : vector<16x16xf32>
    %cst_11 = arith.constant dense<0.000000e+00> : vector<16xf32>
    %34 = vector.multi_reduction <add>, %33, %cst_11 [1] : vector<16x16xf32> to vector<16xf32>
    %35 = vector.shape_cast %34 : vector<16xf32> to vector<16x1xf32>
    %36 = tpu.reciprocal %35 {approx = true} : vector<16x1xf32> -> vector<16x1xf32>
    %37 = vector.broadcast %36 : vector<16x1xf32> to vector<16x16xf32>
    %38 = arith.mulf %33, %37 : vector<16x16xf32>
    %39 = arith.truncf %38 : vector<16x16xf32> to vector<16x16xbf16>
    %cst_12 = arith.constant dense<0.000000e+00> : vector<16x8xf32>
    %40 = tpu.matmul %39, %26, %cst_12 {dimension_numbers = #tpu.dot_dimension_numbers<[1], [0], [0], [1], [0, 0, 1, 1], [], []>} : vector<16x16xbf16>, vector<16x8xbf16>, vector<16x8xf32> -> vector<16x8xf32>
    %41 = vector.extract_strided_slice %18 {offsets = [0, 8], sizes = [16, 8], strides = [1, 1]} : vector<16x32xf32> to vector<16x8xf32>
    %42 = arith.truncf %41 : vector<16x8xf32> to vector<16x8xbf16>
    %43 = vector.extract_strided_slice %19 {offsets = [0, 8], sizes = [16, 8], strides = [1, 1]} : vector<16x32xf32> to vector<16x8xf32>
    %44 = arith.truncf %43 : vector<16x8xf32> to vector<16x8xbf16>
    %45 = vector.extract_strided_slice %20 {offsets = [0, 8], sizes = [16, 8], strides = [1, 1]} : vector<16x32xf32> to vector<16x8xf32>
    %46 = arith.truncf %45 : vector<16x8xf32> to vector<16x8xbf16>
    %cst_13 = arith.constant dense<0.000000e+00> : vector<16x16xf32>
    %47 = tpu.matmul %42, %44, %cst_13 {dimension_numbers = #tpu.dot_dimension_numbers<[1], [1], [0], [0], [0, 0, 1, 0], [], []>} : vector<16x8xbf16>, vector<16x8xbf16>, vector<16x16xf32> -> vector<16x16xf32>
    %48 = arith.addf %47, %4 : vector<16x16xf32>
    %cst_14 = arith.constant dense<0xFF800000> : vector<16xf32>
    %49 = vector.multi_reduction <maximumf>, %48, %cst_14 [1] : vector<16x16xf32> to vector<16xf32>
    %50 = vector.shape_cast %49 : vector<16xf32> to vector<16x1xf32>
    %51 = vector.broadcast %50 : vector<16x1xf32> to vector<16x16xf32>
    %52 = arith.subf %48, %51 : vector<16x16xf32>
    %53 = math.exp %52 : vector<16x16xf32>
    %cst_15 = arith.constant dense<0.000000e+00> : vector<16xf32>
    %54 = vector.multi_reduction <add>, %53, %cst_15 [1] : vector<16x16xf32> to vector<16xf32>
    %55 = vector.shape_cast %54 : vector<16xf32> to vector<16x1xf32>
    %56 = tpu.reciprocal %55 {approx = true} : vector<16x1xf32> -> vector<16x1xf32>
    %57 = vector.broadcast %56 : vector<16x1xf32> to vector<16x16xf32>
    %58 = arith.mulf %53, %57 : vector<16x16xf32>
    %59 = arith.truncf %58 : vector<16x16xf32> to vector<16x16xbf16>
    %cst_16 = arith.constant dense<0.000000e+00> : vector<16x8xf32>
    %60 = tpu.matmul %59, %46, %cst_16 {dimension_numbers = #tpu.dot_dimension_numbers<[1], [0], [0], [1], [0, 0, 1, 1], [], []>} : vector<16x16xbf16>, vector<16x8xbf16>, vector<16x8xf32> -> vector<16x8xf32>
    %61 = vector.extract_strided_slice %18 {offsets = [0, 16], sizes = [16, 8], strides = [1, 1]} : vector<16x32xf32> to vector<16x8xf32>
    %62 = arith.truncf %61 : vector<16x8xf32> to vector<16x8xbf16>
    %63 = vector.extract_strided_slice %19 {offsets = [0, 16], sizes = [16, 8], strides = [1, 1]} : vector<16x32xf32> to vector<16x8xf32>
    %64 = arith.truncf %63 : vector<16x8xf32> to vector<16x8xbf16>
    %65 = vector.extract_strided_slice %20 {offsets = [0, 16], sizes = [16, 8], strides = [1, 1]} : vector<16x32xf32> to vector<16x8xf32>
    %66 = arith.truncf %65 : vector<16x8xf32> to vector<16x8xbf16>
    %cst_17 = arith.constant dense<0.000000e+00> : vector<16x16xf32>
    %67 = tpu.matmul %62, %64, %cst_17 {dimension_numbers = #tpu.dot_dimension_numbers<[1], [1], [0], [0], [0, 0, 1, 0], [], []>} : vector<16x8xbf16>, vector<16x8xbf16>, vector<16x16xf32> -> vector<16x16xf32>
    %68 = arith.addf %67, %4 : vector<16x16xf32>
    %cst_18 = arith.constant dense<0xFF800000> : vector<16xf32>
    %69 = vector.multi_reduction <maximumf>, %68, %cst_18 [1] : vector<16x16xf32> to vector<16xf32>
    %70 = vector.shape_cast %69 : vector<16xf32> to vector<16x1xf32>
    %71 = vector.broadcast %70 : vector<16x1xf32> to vector<16x16xf32>
    %72 = arith.subf %68, %71 : vector<16x16xf32>
    %73 = math.exp %72 : vector<16x16xf32>
    %cst_19 = arith.constant dense<0.000000e+00> : vector<16xf32>
    %74 = vector.multi_reduction <add>, %73, %cst_19 [1] : vector<16x16xf32> to vector<16xf32>
    %75 = vector.shape_cast %74 : vector<16xf32> to vector<16x1xf32>
    %76 = tpu.reciprocal %75 {approx = true} : vector<16x1xf32> -> vector<16x1xf32>
    %77 = vector.broadcast %76 : vector<16x1xf32> to vector<16x16xf32>
    %78 = arith.mulf %73, %77 : vector<16x16xf32>
    %79 = arith.truncf %78 : vector<16x16xf32> to vector<16x16xbf16>
    %cst_20 = arith.constant dense<0.000000e+00> : vector<16x8xf32>
    %80 = tpu.matmul %79, %66, %cst_20 {dimension_numbers = #tpu.dot_dimension_numbers<[1], [0], [0], [1], [0, 0, 1, 1], [], []>} : vector<16x16xbf16>, vector<16x8xbf16>, vector<16x8xf32> -> vector<16x8xf32>
    %81 = vector.extract_strided_slice %18 {offsets = [0, 24], sizes = [16, 8], strides = [1, 1]} : vector<16x32xf32> to vector<16x8xf32>
    %82 = arith.truncf %81 : vector<16x8xf32> to vector<16x8xbf16>
    %83 = vector.extract_strided_slice %19 {offsets = [0, 24], sizes = [16, 8], strides = [1, 1]} : vector<16x32xf32> to vector<16x8xf32>
    %84 = arith.truncf %83 : vector<16x8xf32> to vector<16x8xbf16>
    %85 = vector.extract_strided_slice %20 {offsets = [0, 24], sizes = [16, 8], strides = [1, 1]} : vector<16x32xf32> to vector<16x8xf32>
    %86 = arith.truncf %85 : vector<16x8xf32> to vector<16x8xbf16>
    %cst_21 = arith.constant dense<0.000000e+00> : vector<16x16xf32>
    %87 = tpu.matmul %82, %84, %cst_21 {dimension_numbers = #tpu.dot_dimension_numbers<[1], [1], [0], [0], [0, 0, 1, 0], [], []>} : vector<16x8xbf16>, vector<16x8xbf16>, vector<16x16xf32> -> vector<16x16xf32>
    %88 = arith.addf %87, %4 : vector<16x16xf32>
    %cst_22 = arith.constant dense<0xFF800000> : vector<16xf32>
    %89 = vector.multi_reduction <maximumf>, %88, %cst_22 [1] : vector<16x16xf32> to vector<16xf32>
    %90 = vector.shape_cast %89 : vector<16xf32> to vector<16x1xf32>
    %91 = vector.broadcast %90 : vector<16x1xf32> to vector<16x16xf32>
    %92 = arith.subf %88, %91 : vector<16x16xf32>
    %93 = math.exp %92 : vector<16x16xf32>
    %cst_23 = arith.constant dense<0.000000e+00> : vector<16xf32>
    %94 = vector.multi_reduction <add>, %93, %cst_23 [1] : vector<16x16xf32> to vector<16xf32>
    %95 = vector.shape_cast %94 : vector<16xf32> to vector<16x1xf32>
    %96 = tpu.reciprocal %95 {approx = true} : vector<16x1xf32> -> vector<16x1xf32>
    %97 = vector.broadcast %96 : vector<16x1xf32> to vector<16x16xf32>
    %98 = arith.mulf %93, %97 : vector<16x16xf32>
    %99 = arith.truncf %98 : vector<16x16xf32> to vector<16x16xbf16>
    %cst_24 = arith.constant dense<0.000000e+00> : vector<16x8xf32>
    %100 = tpu.matmul %99, %86, %cst_24 {dimension_numbers = #tpu.dot_dimension_numbers<[1], [0], [0], [1], [0, 0, 1, 1], [], []>} : vector<16x16xbf16>, vector<16x8xbf16>, vector<16x8xf32> -> vector<16x8xf32>
    %101 = tpu.concatenate %40, %60, %80, %100 in 1 : vector<16x8xf32>, vector<16x8xf32>, vector<16x8xf32>, vector<16x8xf32> -> vector<16x32xf32>
    %102 = arith.truncf %101 : vector<16x32xf32> to vector<16x32xbf16>
    %c0_25 = arith.constant 0 : index
    %c0_26 = arith.constant 0 : index
    %103 = vector.load %arg5[%c0_25, %c0_26] : memref<32x32xbf16, #tpu.memory_space<vmem>>, vector<32x32xbf16>
    %cst_27 = arith.constant dense<0.000000e+00> : vector<16x32xf32>
    %104 = tpu.matmul %102, %103, %cst_27 {dimension_numbers = #tpu.dot_dimension_numbers<[1], [0], [0], [1], [0, 0, 1, 1], [], []>} : vector<16x32xbf16>, vector<32x32xbf16>, vector<16x32xf32> -> vector<16x32xf32>
    %105 = vector.broadcast %7 : vector<1x32xf32> to vector<16x32xf32>
    %106 = arith.addf %104, %105 : vector<16x32xf32>
    %107 = arith.addf %106, %0 : vector<16x32xf32>
    %cst_28 = arith.constant dense<0.000000e+00> : vector<16xf32>
    %108 = vector.multi_reduction <add>, %107, %cst_28 [1] : vector<16x32xf32> to vector<16xf32>
    %109 = vector.shape_cast %108 : vector<16xf32> to vector<16x1xf32>
    %cst_29 = arith.constant 3.200000e+01 : f32
    %110 = vector.broadcast %cst_29 : f32 to vector<16x1xf32>
    %111 = arith.divf %109, %110 : vector<16x1xf32>
    %112 = vector.broadcast %111 : vector<16x1xf32> to vector<16x32xf32>
    %113 = arith.subf %107, %112 : vector<16x32xf32>
    %114 = arith.mulf %113, %113 : vector<16x32xf32>
    %cst_30 = arith.constant dense<0.000000e+00> : vector<16xf32>
    %115 = vector.multi_reduction <add>, %114, %cst_30 [1] : vector<16x32xf32> to vector<16xf32>
    %116 = vector.shape_cast %115 : vector<16xf32> to vector<16x1xf32>
    %cst_31 = arith.constant 3.200000e+01 : f32
    %117 = vector.broadcast %cst_31 : f32 to vector<16x1xf32>
    %118 = arith.divf %116, %117 : vector<16x1xf32>
    %119 = vector.broadcast %111 : vector<16x1xf32> to vector<16x32xf32>
    %120 = arith.subf %107, %119 : vector<16x32xf32>
    %cst_32 = arith.constant 9.99999974E-6 : f32
    %121 = vector.broadcast %cst_32 : f32 to vector<16x1xf32>
    %122 = arith.addf %118, %121 : vector<16x1xf32>
    %123 = math.rsqrt %122 : vector<16x1xf32>
    %124 = vector.broadcast %123 : vector<16x1xf32> to vector<16x32xf32>
    %125 = arith.mulf %120, %124 : vector<16x32xf32>
    %126 = vector.broadcast %8 : vector<1x32xf32> to vector<16x32xf32>
    %127 = arith.mulf %125, %126 : vector<16x32xf32>
    %128 = vector.broadcast %9 : vector<1x32xf32> to vector<16x32xf32>
    %129 = arith.addf %127, %128 : vector<16x32xf32>
    %130 = arith.truncf %129 : vector<16x32xf32> to vector<16x32xbf16>
    %c0_33 = arith.constant 0 : index
    %c0_34 = arith.constant 0 : index
    %131 = vector.load %arg6[%c0_33, %c0_34] : memref<32x32xbf16, #tpu.memory_space<vmem>>, vector<32x32xbf16>
    %cst_35 = arith.constant dense<0.000000e+00> : vector<16x32xf32>
    %132 = tpu.matmul %130, %131, %cst_35 {dimension_numbers = #tpu.dot_dimension_numbers<[1], [0], [0], [1], [0, 0, 1, 1], [], []>} : vector<16x32xbf16>, vector<32x32xbf16>, vector<16x32xf32> -> vector<16x32xf32>
    %c0_36 = arith.constant 0 : index
    %c0_37 = arith.constant 0 : index
    %133 = vector.load %arg7[%c0_36, %c0_37] : memref<64x64xbf16, #tpu.memory_space<vmem>>, vector<64x64xbf16>
    %cst_38 = arith.constant dense<0.000000e+00> : vector<16x64xf32>
    %134 = tpu.matmul %2, %133, %cst_38 {dimension_numbers = #tpu.dot_dimension_numbers<[1], [0], [0], [1], [0, 0, 1, 1], [], []>} : vector<16x64xbf16>, vector<64x64xbf16>, vector<16x64xf32> -> vector<16x64xf32>
    %135 = vector.extract_strided_slice %134 {offsets = [0, 0], sizes = [16, 32], strides = [1, 1]} : vector<16x64xf32> to vector<16x32xf32>
    %136 = vector.extract_strided_slice %134 {offsets = [0, 32], sizes = [16, 32], strides = [1, 1]} : vector<16x64xf32> to vector<16x32xf32>
    %137 = vector.extract_strided_slice %132 {offsets = [0, 0], sizes = [16, 8], strides = [1, 1]} : vector<16x32xf32> to vector<16x8xf32>
    %138 = arith.truncf %137 : vector<16x8xf32> to vector<16x8xbf16>
    %139 = vector.extract_strided_slice %135 {offsets = [0, 0], sizes = [16, 8], strides = [1, 1]} : vector<16x32xf32> to vector<16x8xf32>
    %140 = arith.truncf %139 : vector<16x8xf32> to vector<16x8xbf16>
    %141 = vector.extract_strided_slice %136 {offsets = [0, 0], sizes = [16, 8], strides = [1, 1]} : vector<16x32xf32> to vector<16x8xf32>
    %142 = arith.truncf %141 : vector<16x8xf32> to vector<16x8xbf16>
    %cst_39 = arith.constant dense<0.000000e+00> : vector<16x16xf32>
    %143 = tpu.matmul %138, %140, %cst_39 {dimension_numbers = #tpu.dot_dimension_numbers<[1], [1], [0], [0], [0, 0, 1, 0], [], []>} : vector<16x8xbf16>, vector<16x8xbf16>, vector<16x16xf32> -> vector<16x16xf32>
    %144 = arith.addf %143, %5 : vector<16x16xf32>
    %cst_40 = arith.constant dense<0xFF800000> : vector<16xf32>
    %145 = vector.multi_reduction <maximumf>, %144, %cst_40 [1] : vector<16x16xf32> to vector<16xf32>
    %146 = vector.shape_cast %145 : vector<16xf32> to vector<16x1xf32>
    %147 = vector.broadcast %146 : vector<16x1xf32> to vector<16x16xf32>
    %148 = arith.subf %144, %147 : vector<16x16xf32>
    %149 = math.exp %148 : vector<16x16xf32>
    %cst_41 = arith.constant dense<0.000000e+00> : vector<16xf32>
    %150 = vector.multi_reduction <add>, %149, %cst_41 [1] : vector<16x16xf32> to vector<16xf32>
    %151 = vector.shape_cast %150 : vector<16xf32> to vector<16x1xf32>
    %152 = tpu.reciprocal %151 {approx = true} : vector<16x1xf32> -> vector<16x1xf32>
    %153 = vector.broadcast %152 : vector<16x1xf32> to vector<16x16xf32>
    %154 = arith.mulf %149, %153 : vector<16x16xf32>
    %155 = arith.truncf %154 : vector<16x16xf32> to vector<16x16xbf16>
    %cst_42 = arith.constant dense<0.000000e+00> : vector<16x8xf32>
    %156 = tpu.matmul %155, %142, %cst_42 {dimension_numbers = #tpu.dot_dimension_numbers<[1], [0], [0], [1], [0, 0, 1, 1], [], []>} : vector<16x16xbf16>, vector<16x8xbf16>, vector<16x8xf32> -> vector<16x8xf32>
    %157 = vector.extract_strided_slice %132 {offsets = [0, 8], sizes = [16, 8], strides = [1, 1]} : vector<16x32xf32> to vector<16x8xf32>
    %158 = arith.truncf %157 : vector<16x8xf32> to vector<16x8xbf16>
    %159 = vector.extract_strided_slice %135 {offsets = [0, 8], sizes = [16, 8], strides = [1, 1]} : vector<16x32xf32> to vector<16x8xf32>
    %160 = arith.truncf %159 : vector<16x8xf32> to vector<16x8xbf16>
    %161 = vector.extract_strided_slice %136 {offsets = [0, 8], sizes = [16, 8], strides = [1, 1]} : vector<16x32xf32> to vector<16x8xf32>
    %162 = arith.truncf %161 : vector<16x8xf32> to vector<16x8xbf16>
    %cst_43 = arith.constant dense<0.000000e+00> : vector<16x16xf32>
    %163 = tpu.matmul %158, %160, %cst_43 {dimension_numbers = #tpu.dot_dimension_numbers<[1], [1], [0], [0], [0, 0, 1, 0], [], []>} : vector<16x8xbf16>, vector<16x8xbf16>, vector<16x16xf32> -> vector<16x16xf32>
    %164 = arith.addf %163, %5 : vector<16x16xf32>
    %cst_44 = arith.constant dense<0xFF800000> : vector<16xf32>
    %165 = vector.multi_reduction <maximumf>, %164, %cst_44 [1] : vector<16x16xf32> to vector<16xf32>
    %166 = vector.shape_cast %165 : vector<16xf32> to vector<16x1xf32>
    %167 = vector.broadcast %166 : vector<16x1xf32> to vector<16x16xf32>
    %168 = arith.subf %164, %167 : vector<16x16xf32>
    %169 = math.exp %168 : vector<16x16xf32>
    %cst_45 = arith.constant dense<0.000000e+00> : vector<16xf32>
    %170 = vector.multi_reduction <add>, %169, %cst_45 [1] : vector<16x16xf32> to vector<16xf32>
    %171 = vector.shape_cast %170 : vector<16xf32> to vector<16x1xf32>
    %172 = tpu.reciprocal %171 {approx = true} : vector<16x1xf32> -> vector<16x1xf32>
    %173 = vector.broadcast %172 : vector<16x1xf32> to vector<16x16xf32>
    %174 = arith.mulf %169, %173 : vector<16x16xf32>
    %175 = arith.truncf %174 : vector<16x16xf32> to vector<16x16xbf16>
    %cst_46 = arith.constant dense<0.000000e+00> : vector<16x8xf32>
    %176 = tpu.matmul %175, %162, %cst_46 {dimension_numbers = #tpu.dot_dimension_numbers<[1], [0], [0], [1], [0, 0, 1, 1], [], []>} : vector<16x16xbf16>, vector<16x8xbf16>, vector<16x8xf32> -> vector<16x8xf32>
    %177 = vector.extract_strided_slice %132 {offsets = [0, 16], sizes = [16, 8], strides = [1, 1]} : vector<16x32xf32> to vector<16x8xf32>
    %178 = arith.truncf %177 : vector<16x8xf32> to vector<16x8xbf16>
    %179 = vector.extract_strided_slice %135 {offsets = [0, 16], sizes = [16, 8], strides = [1, 1]} : vector<16x32xf32> to vector<16x8xf32>
    %180 = arith.truncf %179 : vector<16x8xf32> to vector<16x8xbf16>
    %181 = vector.extract_strided_slice %136 {offsets = [0, 16], sizes = [16, 8], strides = [1, 1]} : vector<16x32xf32> to vector<16x8xf32>
    %182 = arith.truncf %181 : vector<16x8xf32> to vector<16x8xbf16>
    %cst_47 = arith.constant dense<0.000000e+00> : vector<16x16xf32>
    %183 = tpu.matmul %178, %180, %cst_47 {dimension_numbers = #tpu.dot_dimension_numbers<[1], [1], [0], [0], [0, 0, 1, 0], [], []>} : vector<16x8xbf16>, vector<16x8xbf16>, vector<16x16xf32> -> vector<16x16xf32>
    %184 = arith.addf %183, %5 : vector<16x16xf32>
    %cst_48 = arith.constant dense<0xFF800000> : vector<16xf32>
    %185 = vector.multi_reduction <maximumf>, %184, %cst_48 [1] : vector<16x16xf32> to vector<16xf32>
    %186 = vector.shape_cast %185 : vector<16xf32> to vector<16x1xf32>
    %187 = vector.broadcast %186 : vector<16x1xf32> to vector<16x16xf32>
    %188 = arith.subf %184, %187 : vector<16x16xf32>
    %189 = math.exp %188 : vector<16x16xf32>
    %cst_49 = arith.constant dense<0.000000e+00> : vector<16xf32>
    %190 = vector.multi_reduction <add>, %189, %cst_49 [1] : vector<16x16xf32> to vector<16xf32>
    %191 = vector.shape_cast %190 : vector<16xf32> to vector<16x1xf32>
    %192 = tpu.reciprocal %191 {approx = true} : vector<16x1xf32> -> vector<16x1xf32>
    %193 = vector.broadcast %192 : vector<16x1xf32> to vector<16x16xf32>
    %194 = arith.mulf %189, %193 : vector<16x16xf32>
    %195 = arith.truncf %194 : vector<16x16xf32> to vector<16x16xbf16>
    %cst_50 = arith.constant dense<0.000000e+00> : vector<16x8xf32>
    %196 = tpu.matmul %195, %182, %cst_50 {dimension_numbers = #tpu.dot_dimension_numbers<[1], [0], [0], [1], [0, 0, 1, 1], [], []>} : vector<16x16xbf16>, vector<16x8xbf16>, vector<16x8xf32> -> vector<16x8xf32>
    %197 = vector.extract_strided_slice %132 {offsets = [0, 24], sizes = [16, 8], strides = [1, 1]} : vector<16x32xf32> to vector<16x8xf32>
    %198 = arith.truncf %197 : vector<16x8xf32> to vector<16x8xbf16>
    %199 = vector.extract_strided_slice %135 {offsets = [0, 24], sizes = [16, 8], strides = [1, 1]} : vector<16x32xf32> to vector<16x8xf32>
    %200 = arith.truncf %199 : vector<16x8xf32> to vector<16x8xbf16>
    %201 = vector.extract_strided_slice %136 {offsets = [0, 24], sizes = [16, 8], strides = [1, 1]} : vector<16x32xf32> to vector<16x8xf32>
    %202 = arith.truncf %201 : vector<16x8xf32> to vector<16x8xbf16>
    %cst_51 = arith.constant dense<0.000000e+00> : vector<16x16xf32>
    %203 = tpu.matmul %198, %200, %cst_51 {dimension_numbers = #tpu.dot_dimension_numbers<[1], [1], [0], [0], [0, 0, 1, 0], [], []>} : vector<16x8xbf16>, vector<16x8xbf16>, vector<16x16xf32> -> vector<16x16xf32>
    %204 = arith.addf %203, %5 : vector<16x16xf32>
    %cst_52 = arith.constant dense<0xFF800000> : vector<16xf32>
    %205 = vector.multi_reduction <maximumf>, %204, %cst_52 [1] : vector<16x16xf32> to vector<16xf32>
    %206 = vector.shape_cast %205 : vector<16xf32> to vector<16x1xf32>
    %207 = vector.broadcast %206 : vector<16x1xf32> to vector<16x16xf32>
    %208 = arith.subf %204, %207 : vector<16x16xf32>
    %209 = math.exp %208 : vector<16x16xf32>
    %cst_53 = arith.constant dense<0.000000e+00> : vector<16xf32>
    %210 = vector.multi_reduction <add>, %209, %cst_53 [1] : vector<16x16xf32> to vector<16xf32>
    %211 = vector.shape_cast %210 : vector<16xf32> to vector<16x1xf32>
    %212 = tpu.reciprocal %211 {approx = true} : vector<16x1xf32> -> vector<16x1xf32>
    %213 = vector.broadcast %212 : vector<16x1xf32> to vector<16x16xf32>
    %214 = arith.mulf %209, %213 : vector<16x16xf32>
    %215 = arith.truncf %214 : vector<16x16xf32> to vector<16x16xbf16>
    %cst_54 = arith.constant dense<0.000000e+00> : vector<16x8xf32>
    %216 = tpu.matmul %215, %202, %cst_54 {dimension_numbers = #tpu.dot_dimension_numbers<[1], [0], [0], [1], [0, 0, 1, 1], [], []>} : vector<16x16xbf16>, vector<16x8xbf16>, vector<16x8xf32> -> vector<16x8xf32>
    %217 = tpu.concatenate %156, %176, %196, %216 in 1 : vector<16x8xf32>, vector<16x8xf32>, vector<16x8xf32>, vector<16x8xf32> -> vector<16x32xf32>
    %218 = arith.truncf %217 : vector<16x32xf32> to vector<16x32xbf16>
    %c0_55 = arith.constant 0 : index
    %c0_56 = arith.constant 0 : index
    %219 = vector.load %arg8[%c0_55, %c0_56] : memref<32x32xbf16, #tpu.memory_space<vmem>>, vector<32x32xbf16>
    %cst_57 = arith.constant dense<0.000000e+00> : vector<16x32xf32>
    %220 = tpu.matmul %218, %219, %cst_57 {dimension_numbers = #tpu.dot_dimension_numbers<[1], [0], [0], [1], [0, 0, 1, 1], [], []>} : vector<16x32xbf16>, vector<32x32xbf16>, vector<16x32xf32> -> vector<16x32xf32>
    %221 = vector.broadcast %10 : vector<1x32xf32> to vector<16x32xf32>
    %222 = arith.addf %220, %221 : vector<16x32xf32>
    %223 = arith.addf %222, %129 : vector<16x32xf32>
    %cst_58 = arith.constant dense<0.000000e+00> : vector<16xf32>
    %224 = vector.multi_reduction <add>, %223, %cst_58 [1] : vector<16x32xf32> to vector<16xf32>
    %225 = vector.shape_cast %224 : vector<16xf32> to vector<16x1xf32>
    %cst_59 = arith.constant 3.200000e+01 : f32
    %226 = vector.broadcast %cst_59 : f32 to vector<16x1xf32>
    %227 = arith.divf %225, %226 : vector<16x1xf32>
    %228 = vector.broadcast %227 : vector<16x1xf32> to vector<16x32xf32>
    %229 = arith.subf %223, %228 : vector<16x32xf32>
    %230 = arith.mulf %229, %229 : vector<16x32xf32>
    %cst_60 = arith.constant dense<0.000000e+00> : vector<16xf32>
    %231 = vector.multi_reduction <add>, %230, %cst_60 [1] : vector<16x32xf32> to vector<16xf32>
    %232 = vector.shape_cast %231 : vector<16xf32> to vector<16x1xf32>
    %cst_61 = arith.constant 3.200000e+01 : f32
    %233 = vector.broadcast %cst_61 : f32 to vector<16x1xf32>
    %234 = arith.divf %232, %233 : vector<16x1xf32>
    %235 = vector.broadcast %227 : vector<16x1xf32> to vector<16x32xf32>
    %236 = arith.subf %223, %235 : vector<16x32xf32>
    %cst_62 = arith.constant 9.99999974E-6 : f32
    %237 = vector.broadcast %cst_62 : f32 to vector<16x1xf32>
    %238 = arith.addf %234, %237 : vector<16x1xf32>
    %239 = math.rsqrt %238 : vector<16x1xf32>
    %240 = vector.broadcast %239 : vector<16x1xf32> to vector<16x32xf32>
    %241 = arith.mulf %236, %240 : vector<16x32xf32>
    %242 = vector.broadcast %11 : vector<1x32xf32> to vector<16x32xf32>
    %243 = arith.mulf %241, %242 : vector<16x32xf32>
    %244 = vector.broadcast %12 : vector<1x32xf32> to vector<16x32xf32>
    %245 = arith.addf %243, %244 : vector<16x32xf32>
    %246 = arith.truncf %245 : vector<16x32xf32> to vector<16x32xbf16>
    %c0_63 = arith.constant 0 : index
    %c0_64 = arith.constant 0 : index
    %247 = vector.load %arg9[%c0_63, %c0_64] : memref<32x128xbf16, #tpu.memory_space<vmem>>, vector<32x128xbf16>
    %cst_65 = arith.constant dense<0.000000e+00> : vector<16x128xf32>
    %248 = tpu.matmul %246, %247, %cst_65 {dimension_numbers = #tpu.dot_dimension_numbers<[1], [0], [0], [1], [0, 0, 1, 1], [], []>} : vector<16x32xbf16>, vector<32x128xbf16>, vector<16x128xf32> -> vector<16x128xf32>
    %c0_66 = arith.constant 0 : index
    %c0_67 = arith.constant 0 : index
    %249 = vector.load %arg12[%c0_66, %c0_67] : memref<1x128xf32, #tpu.memory_space<vmem>>, vector<1x128xf32>
    %250 = vector.broadcast %249 : vector<1x128xf32> to vector<16x128xf32>
    %251 = arith.addf %248, %250 : vector<16x128xf32>
    %cst_68 = arith.constant 0.000000e+00 : f32
    %252 = vector.broadcast %cst_68 : f32 to vector<16x128xf32>
    %253 = arith.maximumf %251, %252 : vector<16x128xf32>
    %254 = arith.truncf %253 : vector<16x128xf32> to vector<16x128xbf16>
    %c0_69 = arith.constant 0 : index
    %c0_70 = arith.constant 0 : index
    %255 = vector.load %arg10[%c0_69, %c0_70] : memref<128x32xbf16, #tpu.memory_space<vmem>>, vector<128x32xbf16>
    %cst_71 = arith.constant dense<0.000000e+00> : vector<16x32xf32>
    %256 = tpu.matmul %254, %255, %cst_71 {dimension_numbers = #tpu.dot_dimension_numbers<[1], [0], [0], [1], [0, 0, 1, 1], [], []>} : vector<16x128xbf16>, vector<128x32xbf16>, vector<16x32xf32> -> vector<16x32xf32>
    %257 = vector.broadcast %13 : vector<1x32xf32> to vector<16x32xf32>
    %258 = arith.addf %256, %257 : vector<16x32xf32>
    %259 = arith.addf %258, %245 : vector<16x32xf32>
    %cst_72 = arith.constant dense<0.000000e+00> : vector<16xf32>
    %260 = vector.multi_reduction <add>, %259, %cst_72 [1] : vector<16x32xf32> to vector<16xf32>
    %261 = vector.shape_cast %260 : vector<16xf32> to vector<16x1xf32>
    %cst_73 = arith.constant 3.200000e+01 : f32
    %262 = vector.broadcast %cst_73 : f32 to vector<16x1xf32>
    %263 = arith.divf %261, %262 : vector<16x1xf32>
    %264 = vector.broadcast %263 : vector<16x1xf32> to vector<16x32xf32>
    %265 = arith.subf %259, %264 : vector<16x32xf32>
    %266 = arith.mulf %265, %265 : vector<16x32xf32>
    %cst_74 = arith.constant dense<0.000000e+00> : vector<16xf32>
    %267 = vector.multi_reduction <add>, %266, %cst_74 [1] : vector<16x32xf32> to vector<16xf32>
    %268 = vector.shape_cast %267 : vector<16xf32> to vector<16x1xf32>
    %cst_75 = arith.constant 3.200000e+01 : f32
    %269 = vector.broadcast %cst_75 : f32 to vector<16x1xf32>
    %270 = arith.divf %268, %269 : vector<16x1xf32>
    %271 = vector.broadcast %263 : vector<16x1xf32> to vector<16x32xf32>
    %272 = arith.subf %259, %271 : vector<16x32xf32>
    %cst_76 = arith.constant 9.99999974E-6 : f32
    %273 = vector.broadcast %cst_76 : f32 to vector<16x1xf32>
    %274 = arith.addf %270, %273 : vector<16x1xf32>
    %275 = math.rsqrt %274 : vector<16x1xf32>
    %276 = vector.broadcast %275 : vector<16x1xf32> to vector<16x32xf32>
    %277 = arith.mulf %272, %276 : vector<16x32xf32>
    %278 = vector.broadcast %14 : vector<1x32xf32> to vector<16x32xf32>
    %279 = arith.mulf %277, %278 : vector<16x32xf32>
    %280 = vector.broadcast %15 : vector<1x32xf32> to vector<16x32xf32>
    %281 = arith.addf %279, %280 : vector<16x32xf32>
    %c0_77 = arith.constant 0 : index
    %c0_78 = arith.constant 0 : index
    %282 = vector.load %arg13[%c0_77, %c0_78] : memref<16x32xf32, #tpu.memory_space<vmem>>, vector<16x32xf32>
    tpu.vector_store %arg13[%c0_77, %c0_78], %281 {strides = array<i32>} : memref<16x32xf32, #tpu.memory_space<vmem>>, vector<16x32xf32>,
    return
  }
  func.func @transform_0(%arg0: i32) -> (i32, i32) {
    %c0_i32 = arith.constant 0 : i32
    %c0_i32_0 = arith.constant 0 : i32
    %c0_i32_1 = arith.constant 0 : i32
    return %c0_i32, %c0_i32_0 : i32, i32
  }
  func.func @transform_1(%arg0: i32) -> (i32, i32) {
    %c0_i32 = arith.constant 0 : i32
    %c0_i32_0 = arith.constant 0 : i32
    %c0_i32_1 = arith.constant 0 : i32
    return %c0_i32, %c0_i32_0 : i32, i32
  }
  func.func @transform_2(%arg0: i32) -> (i32, i32) {
    %c0_i32 = arith.constant 0 : i32
    %c0_i32_0 = arith.constant 0 : i32
    %c0_i32_1 = arith.constant 0 : i32
    return %c0_i32, %c0_i32_0 : i32, i32
  }
  func.func @transform_3(%arg0: i32) -> (i32, i32) {
    %c0_i32 = arith.constant 0 : i32
    %c0_i32_0 = arith.constant 0 : i32
    %c0_i32_1 = arith.constant 0 : i32
    return %c0_i32, %c0_i32_0 : i32, i32
  }
  func.func @transform_4(%arg0: i32) -> (i32, i32) {
    %c0_i32 = arith.constant 0 : i32
    %c0_i32_0 = arith.constant 0 : i32
    %c0_i32_1 = arith.constant 0 : i32
    return %c0_i32, %c0_i32_0 : i32, i32
  }
  func.func @transform_5(%arg0: i32) -> (i32, i32) {
    %c0_i32 = arith.constant 0 : i32
    %c0_i32_0 = arith.constant 0 : i32
    %c0_i32_1 = arith.constant 0 : i32
    return %c0_i32, %c0_i32_0 : i32, i32
  }
  func.func @transform_6(%arg0: i32) -> (i32, i32) {
    %c0_i32 = arith.constant 0 : i32
    %c0_i32_0 = arith.constant 0 : i32
    %c0_i32_1 = arith.constant 0 : i32
    return %c0_i32, %c0_i32_0 : i32, i32
  }
  func.func @transform_7(%arg0: i32) -> (i32, i32) {
    %c0_i32 = arith.constant 0 : i32
    %c0_i32_0 = arith.constant 0 : i32
    %c0_i32_1 = arith.constant 0 : i32
    return %c0_i32, %c0_i32_0 : i32, i32
  }
  func.func @transform_8(%arg0: i32) -> (i32, i32) {
    %c0_i32 = arith.constant 0 : i32
    %c0_i32_0 = arith.constant 0 : i32
    %c0_i32_1 = arith.constant 0 : i32
    return %c0_i32, %c0_i32_0 : i32, i32
  }
  func.func @transform_9(%arg0: i32) -> (i32, i32) {
    %c0_i32 = arith.constant 0 : i32
    %c0_i32_0 = arith.constant 0 : i32
    %c0_i32_1 = arith.constant 0 : i32
    return %c0_i32, %c0_i32_0 : i32, i32
  }
  func.func @transform_10(%arg0: i32) -> (i32, i32) {
    %c0_i32 = arith.constant 0 : i32
    %c0_i32_0 = arith.constant 0 : i32
    %c0_i32_1 = arith.constant 0 : i32
    return %c0_i32, %c0_i32_0 : i32, i32
  }
  func.func @transform_11(%arg0: i32) -> (i32, i32) {
    %c0_i32 = arith.constant 0 : i32
    %c0_i32_0 = arith.constant 0 : i32
    %c0_i32_1 = arith.constant 0 : i32
    return %c0_i32, %c0_i32_0 : i32, i32
  }
  func.func @transform_12(%arg0: i32) -> (i32, i32) {
    %c0_i32 = arith.constant 0 : i32
    %c0_i32_0 = arith.constant 0 : i32
    %c0_i32_1 = arith.constant 0 : i32
    return %c0_i32, %c0_i32_0 : i32, i32
  }
}

</mosaic_0001>

<llo_original>
// kernel: decoder_block.1
$region0: #{decoder_block.1}
  #allocation0 [shape = 'u32[]', space=smem, size = 0x4, offset = 0x4, fixed_abs, tag = 'smem constant byte address 0x4 - core index']
  #allocation1 [shape = 'u32[72,128]{1,0:T(1,128)}', space=vmem, size = 0x9000, scoped, tag = 'internal scratch']
  %s0 = inlined_call_operand.vmem [shape: f32[16,32], index: 0, kind: input, shape index: {}]
  %s1 = inlined_call_operand.vmem [shape: bf16[16,64], index: 1, kind: input, shape index: {}]
  %s2 = inlined_call_operand.vmem [shape: f32[16,32], index: 2, kind: input, shape index: {}]
  %s3 = inlined_call_operand.vmem [shape: bf16[32,96], index: 3, kind: input, shape index: {}]
  %s4 = inlined_call_operand.vmem [shape: bf16[32,32], index: 4, kind: input, shape index: {}]
  %s5 = inlined_call_operand.vmem [shape: bf16[32,32], index: 5, kind: input, shape index: {}]
  %s6 = inlined_call_operand.vmem [shape: bf16[64,64], index: 6, kind: input, shape index: {}]
  %s7 = inlined_call_operand.vmem [shape: bf16[32,32], index: 7, kind: input, shape index: {}]
  %s8 = inlined_call_operand.vmem [shape: bf16[32,128], index: 8, kind: input, shape index: {}]
  %s9 = inlined_call_operand.vmem [shape: bf16[128,32], index: 9, kind: input, shape index: {}]
  %s10 = inlined_call_operand.vmem [shape: f32[9,32], index: 10, kind: input, shape index: {}]
  %s11 = inlined_call_operand.vmem [shape: f32[1,128], index: 11, kind: input, shape index: {}]
  %s12 = inlined_call_operand.hbm [shape: f32[16,32], index: 12, kind: output, shape index: {}]
  %s13 = sld [smem:[#allocation0]]
  $region58: #{decoder_block.1} parent=0
    _
  %s15 = ssub.s32 1, %s13
  %s16 = scalar_select 0, %s15, %s13
  $region1: #{decoder_block.1} parent=0
    #allocation2 [shape = 'u8[8192]{0}', space=vmem, size = 0x2000, scoped, tag = 'output window, operand 0, single buffered']
    #allocation3 [shape = 's32[1]{0}', space=sflag, size = 0x4, scoped, tag = 'scoped memory for decoder_block.1']
    %17 = vsyncpa [#allocation3], 0
    // Predicated region
    $region2: #{decoder_block.1} parent=1 // pred_check
      _
    $region3: #{decoder_block.1} parent=1 // pred_check_branch
      %19 = sbr.rel (0) target = $region5
    $region4: #{decoder_block.1} parent=1 // pred_region
      _
    $region5: #{decoder_block.1} parent=1 // pred_fallthru
      _
    // Predicated region
    $region6: #{decoder_block.1} parent=1 // pred_check
      _
    $region7: #{decoder_block.1} parent=1 // pred_check_branch
      %21 = sbr.rel (0) target = $region9
    $region8: #{decoder_block.1} parent=1 // pred_region
      _
    $region9: #{decoder_block.1} parent=1 // pred_fallthru
      _
    // Predicated region
    $region10: #{decoder_block.1} parent=1 // pred_check
      _
    $region11: #{decoder_block.1} parent=1 // pred_check_branch
      %23 = sbr.rel (0) target = $region13
    $region12: #{decoder_block.1} parent=1 // pred_region
      _
    $region13: #{decoder_block.1} parent=1 // pred_fallthru
      _
    // Predicated region
    $region14: #{decoder_block.1} parent=1 // pred_check
      _
    $region15: #{decoder_block.1} parent=1 // pred_check_branch
      %25 = sbr.rel (0) target = $region17
    $region16: #{decoder_block.1} parent=1 // pred_region
      _
    $region17: #{decoder_block.1} parent=1 // pred_fallthru
      _
    // Predicated region
    $region18: #{decoder_block.1} parent=1 // pred_check
      _
    $region19: #{decoder_block.1} parent=1 // pred_check_branch
      %27 = sbr.rel (0) target = $region21
    $region20: #{decoder_block.1} parent=1 // pred_region
      _
    $region21: #{decoder_block.1} parent=1 // pred_fallthru
      _
    // Predicated region
    $region22: #{decoder_block.1} parent=1 // pred_check
      _
    $region23: #{decoder_block.1} parent=1 // pred_check_branch
      %29 = sbr.rel (0) target = $region25
    $region24: #{decoder_block.1} parent=1 // pred_region
      _
    $region25: #{decoder_block.1} parent=1 // pred_fallthru
      _
    // Predicated region
    $region26: #{decoder_block.1} parent=1 // pred_check
      _
    $region27: #{decoder_block.1} parent=1 // pred_check_branch
      %31 = sbr.rel (0) target = $region29
    $region28: #{decoder_block.1} parent=1 // pred_region
      _
    $region29: #{decoder_block.1} parent=1 // pred_fallthru
      _
    // Predicated region
    $region30: #{decoder_block.1} parent=1 // pred_check
      _
    $region31: #{decoder_block.1} parent=1 // pred_check_branch
      %33 = sbr.rel (0) target = $region33
    $region32: #{decoder_block.1} parent=1 // pred_region
      _
    $region33: #{decoder_block.1} parent=1 // pred_fallthru
      _
    // Predicated region
    $region34: #{decoder_block.1} parent=1 // pred_check
      _
    $region35: #{decoder_block.1} parent=1 // pred_check_branch
      %35 = sbr.rel (0) target = $region37
    $region36: #{decoder_block.1} parent=1 // pred_region
      _
    $region37: #{decoder_block.1} parent=1 // pred_fallthru
      _
    // Predicated region
    $region38: #{decoder_block.1} parent=1 // pred_check
      _
    $region39: #{decoder_block.1} parent=1 // pred_check_branch
      %37 = sbr.rel (0) target = $region41
    $region40: #{decoder_block.1} parent=1 // pred_region
      _
    $region41: #{decoder_block.1} parent=1 // pred_fallthru
      _
    // Predicated region
    $region42: #{decoder_block.1} parent=1 // pred_check
      _
    $region43: #{decoder_block.1} parent=1 // pred_check_branch
      %39 = sbr.rel (0) target = $region45
    $region44: #{decoder_block.1} parent=1 // pred_region
      _
    $region45: #{decoder_block.1} parent=1 // pred_fallthru
      _
    // Predicated region
    $region46: #{decoder_block.1} parent=1 // pred_check
      _
    $region47: #{decoder_block.1} parent=1 // pred_check_branch
      %41 = sbr.rel (0) target = $region49
    $region48: #{decoder_block.1} parent=1 // pred_region
      _
    $region49: #{decoder_block.1} parent=1 // pred_fallthru
      _
    %v43 = vld [vmem:[%s0] sm:$0xff]
    %v44 = vld [vmem:[%s0 + $0x8] sm:$0xff]
    %v45 = vpack.c.bf16 %v44, %v43
    %v46 = vld [vmem:[%s1] sm:$0xf]
    %v47 = vld [vmem:[%s1 + $0x4] sm:$0xf]
    %v48 = vld [vmem:[%s2] sm:$0xff]
    %v49 = vld [vmem:[%s2 + $0x8] sm:$0xff]
    %v50 = vld [vmem:[%s10] sm:$0xff]
    %v51 = vld [vmem:[%s10 + $0x8] sm:$0x1]
    %v52 = vld [vmem:[%s3] sm:$0xf]
    %v53 = vld [vmem:[%s3 + $0x4] sm:$0xf]
    %v54 = vld [vmem:[%s3 + $0x8] sm:$0xf]
    %v55 = vld [vmem:[%s3 + $0xc] sm:$0xf]
    %v60 = vunpack.c.l.b16 %v52
    %v61 = vunpack.c.l.b16 %v53
    %v62 = vunpack.c.l.b16 %v54
    %v63 = vunpack.c.l.b16 %v55
    %v64 = vpack.c.b16 %v61, %v60
    %v65 = vpack.c.b16 %v63, %v62
    %vm68 = vcmask 261120
    %v70 = vsel %vm68, %v45, 0
    %72 = vmatpush.bf16.msra.mxu0 0
    %73 = vmatpush.bf16.msra.mxu0 0
    %74 = vmatpush.bf16.msra.mxu0 0
    %75 = vmatpush.bf16.msra.mxu0 0
    %76 = vmatpush.bf16.msra.mxu0 0
    %77 = vmatpush.bf16.msra.mxu0 0
    %78 = vmatpush.bf16.msra.mxu0 %v65
    %79 = vmatpush.bf16.msra.mxu0 %v64
    %80 = vmatmul.bf16.gmra.mxu0 %v70
    %v81 = vpop.f32.mrf.mxu0
    %v82 = vadd.f32 0.0, %v81
    %v83 = vpop.f32.mrf.mxu0
    %v84 = vadd.f32 0.0, %v83
    %85 = vdwg.mxu0
    %v86 = vpack.c.bf16 %v84, %v82
    %88 = vrot.lane.b32.xlu0 %v86, 96
    %v89 = vpop.permute.xlu0 %88
    %vm90 = vcmask 64512
    %v92 = vsel %vm90, %v86, 0
    %v95 = vsel %vm90, %v89, 0
    %97 = vmatpush.bf16.xpose.msra.mxu0 0
    %98 = vmatpush.bf16.xpose.msra.mxu0 0
    %99 = vmatpush.bf16.xpose.msra.mxu0 0
    %100 = vmatpush.bf16.xpose.msra.mxu0 0
    %101 = vmatpush.bf16.xpose.msra.mxu0 0
    %102 = vmatpush.bf16.xpose.msra.mxu0 0
    %103 = vmatpush.bf16.xpose.msra.mxu0 0
    %104 = vmatpush.bf16.xpose.msra.mxu0 %v95
    %105 = vmatmul.bf16.gmra.mxu0 %v92
    %v106 = vpop.f32.mrf.mxu0
    %v107 = vadd.f32 %v48, %v106
    %v108 = vpop.f32.mrf.mxu0
    %v109 = vadd.f32 %v49, %v108
    %110 = vdwg.mxu0
    %vm111 = vcmask 130048
    %v112 = vsel %vm111, %v107, -inf
    %113 = vmax.xlane.f32.xlu0 %v112
    %v114 = vpop.xlane.xlu0 %113
    %v115 = vsel %vm111, %v109, -inf
    %116 = vmax.xlane.f32.xlu0 %v115
    %v117 = vpop.xlane.xlu0 %116
    %v118 = vsub.f32 %v107, %v114
    %v119 = vsub.f32 %v109, %v117
    %v120 = vmul.f32 %v118, 1.442695
    %v121 = vpow.pop %v120
    %v122 = vmul.f32 %v119, 1.442695
    %v123 = vpow.pop %v122
    %v124 = vsel %vm111, %v121, 0.0
    %125 = vadd.xlane.f32.xlu0 %v124
    %v126 = vpop.xlane.xlu0 %125
    %v127 = vsel %vm111, %v123, 0.0
    %128 = vadd.xlane.f32.xlu0 %v127
    %v129 = vpop.xlane.xlu0 %128
    %v130 = vrcp.pop %v126
    %v131 = vrcp.pop %v129
    %v132 = vmul.f32 %v121, %v130
    %v133 = vmul.f32 %v123, %v131
    %v134 = vpack.c.bf16 %v133, %v132
    %135 = vrot.lane.b32.xlu0 %v86, 64
    %v136 = vpop.permute.xlu0 %135
    %v139 = vsel %vm111, %v134, 0
    %141 = vmatpush.bf16.msra.mxu0 0
    %142 = vmatpush.bf16.msra.mxu0 0
    %143 = vmatpush.bf16.msra.mxu0 0
    %144 = vmatpush.bf16.msra.mxu0 0
    %145 = vmatpush.bf16.msra.mxu0 0
    %146 = vmatpush.bf16.msra.mxu0 0
    %147 = vmatpush.bf16.msra.mxu0 0
    %148 = vmatpush.bf16.msra.mxu0 %v136
    %149 = vmatmul.bf16.gmra.mxu0 %v139
    %v150 = vpop.f32.mrf.mxu0
    %v151 = vadd.f32 0.0, %v150
    %v152 = vpop.f32.mrf.mxu0
    %v153 = vadd.f32 0.0, %v152
    %154 = vdwg.mxu0
    %155 = vrot.lane.b32.xlu0 %v86, 120
    %v156 = vpop.permute.xlu0 %155
    %157 = vrot.lane.b32.xlu0 %v86, 88
    %v158 = vpop.permute.xlu0 %157
    %v160 = vsel %vm90, %v156, 0
    %v163 = vsel %vm90, %v158, 0
    %165 = vmatpush.bf16.xpose.msra.mxu0 0
    %166 = vmatpush.bf16.xpose.msra.mxu0 0
    %167 = vmatpush.bf16.xpose.msra.mxu0 0
    %168 = vmatpush.bf16.xpose.msra.mxu0 0
    %169 = vmatpush.bf16.xpose.msra.mxu0 0
    %170 = vmatpush.bf16.xpose.msra.mxu0 0
    %171 = vmatpush.bf16.xpose.msra.mxu0 0
    %172 = vmatpush.bf16.xpose.msra.mxu0 %v163
    %173 = vmatmul.bf16.gmra.mxu0 %v160
    %v174 = vpop.f32.mrf.mxu0
    %v175 = vadd.f32 %v48, %v174
    %v176 = vpop.f32.mrf.mxu0
    %v177 = vadd.f32 %v49, %v176
    %178 = vdwg.mxu0
    %v179 = vsel %vm111, %v175, -inf
    %180 = vmax.xlane.f32.xlu0 %v179
    %v181 = vpop.xlane.xlu0 %180
    %v182 = vsel %vm111, %v177, -inf
    %183 = vmax.xlane.f32.xlu0 %v182
    %v184 = vpop.xlane.xlu0 %183
    %v185 = vsub.f32 %v175, %v181
    %v186 = vsub.f32 %v177, %v184
    %v187 = vmul.f32 %v185, 1.442695
    %v188 = vpow.pop %v187
    %v189 = vmul.f32 %v186, 1.442695
    %v190 = vpow.pop %v189
    %v191 = vsel %vm111, %v188, 0.0
    %192 = vadd.xlane.f32.xlu0 %v191
    %v193 = vpop.xlane.xlu0 %192
    %v194 = vsel %vm111, %v190, 0.0
    %195 = vadd.xlane.f32.xlu0 %v194
    %v196 = vpop.xlane.xlu0 %195
    %v197 = vrcp.pop %v193
    %v198 = vrcp.pop %v196
    %v199 = vmul.f32 %v188, %v197
    %v200 = vmul.f32 %v190, %v198
    %v201 = vpack.c.bf16 %v200, %v199
    %202 = vrot.lane.b32.xlu0 %v86, 56
    %v203 = vpop.permute.xlu0 %202
    %v206 = vsel %vm111, %v201, 0
    %208 = vmatpush.bf16.msra.mxu0 0
    %209 = vmatpush.bf16.msra.mxu0 0
    %210 = vmatpush.bf16.msra.mxu0 0
    %211 = vmatpush.bf16.msra.mxu0 0
    %212 = vmatpush.bf16.msra.mxu0 0
    %213 = vmatpush.bf16.msra.mxu0 0
    %214 = vmatpush.bf16.msra.mxu0 0
    %215 = vmatpush.bf16.msra.mxu0 %v203
    %216 = vmatmul.bf16.gmra.mxu0 %v206
    %v217 = vpop.f32.mrf.mxu0
    %v218 = vadd.f32 0.0, %v217
    %v219 = vpop.f32.mrf.mxu0
    %v220 = vadd.f32 0.0, %v219
    %221 = vdwg.mxu0
    %222 = vrot.lane.b32.xlu0 %v86, 112
    %v223 = vpop.permute.xlu0 %222
    %224 = vrot.lane.b32.xlu0 %v86, 80
    %v225 = vpop.permute.xlu0 %224
    %v227 = vsel %vm90, %v223, 0
    %v230 = vsel %vm90, %v225, 0
    %232 = vmatpush.bf16.xpose.msra.mxu0 0
    %233 = vmatpush.bf16.xpose.msra.mxu0 0
    %234 = vmatpush.bf16.xpose.msra.mxu0 0
    %235 = vmatpush.bf16.xpose.msra.mxu0 0
    %236 = vmatpush.bf16.xpose.msra.mxu0 0
    %237 = vmatpush.bf16.xpose.msra.mxu0 0
    %238 = vmatpush.bf16.xpose.msra.mxu0 0
    %239 = vmatpush.bf16.xpose.msra.mxu0 %v230
    %240 = vmatmul.bf16.gmra.mxu0 %v227
    %v241 = vpop.f32.mrf.mxu0
    %v242 = vadd.f32 %v48, %v241
    %v243 = vpop.f32.mrf.mxu0
    %v244 = vadd.f32 %v49, %v243
    %245 = vdwg.mxu0
    %v246 = vsel %vm111, %v242, -inf
    %247 = vmax.xlane.f32.xlu0 %v246
    %v248 = vpop.xlane.xlu0 %247
    %v249 = vsel %vm111, %v244, -inf
    %250 = vmax.xlane.f32.xlu0 %v249
    %v251 = vpop.xlane.xlu0 %250
    %v252 = vsub.f32 %v242, %v248
    %v253 = vsub.f32 %v244, %v251
    %v254 = vmul.f32 %v252, 1.442695
    %v255 = vpow.pop %v254
    %v256 = vmul.f32 %v253, 1.442695
    %v257 = vpow.pop %v256
    %v258 = vsel %vm111, %v255, 0.0
    %259 = vadd.xlane.f32.xlu0 %v258
    %v260 = vpop.xlane.xlu0 %259
    %v261 = vsel %vm111, %v257, 0.0
    %262 = vadd.xlane.f32.xlu0 %v261
    %v263 = vpop.xlane.xlu0 %262
    %v264 = vrcp.pop %v260
    %v265 = vrcp.pop %v263
    %v266 = vmul.f32 %v255, %v264
    %v267 = vmul.f32 %v257, %v265
    %v268 = vpack.c.bf16 %v267, %v266
    %269 = vrot.lane.b32.xlu0 %v86, 48
    %v270 = vpop.permute.xlu0 %269
    %v273 = vsel %vm111, %v268, 0
    %275 = vmatpush.bf16.msra.mxu0 0
    %276 = vmatpush.bf16.msra.mxu0 0
    %277 = vmatpush.bf16.msra.mxu0 0
    %278 = vmatpush.bf16.msra.mxu0 0
    %279 = vmatpush.bf16.msra.mxu0 0
    %280 = vmatpush.bf16.msra.mxu0 0
    %281 = vmatpush.bf16.msra.mxu0 0
    %282 = vmatpush.bf16.msra.mxu0 %v270
    %283 = vmatmul.bf16.gmra.mxu0 %v273
    %v284 = vpop.f32.mrf.mxu0
    %v285 = vadd.f32 0.0, %v284
    %v286 = vpop.f32.mrf.mxu0
    %v287 = vadd.f32 0.0, %v286
    %288 = vdwg.mxu0
    %289 = vrot.lane.b32.xlu0 %v86, 104
    %v290 = vpop.permute.xlu0 %289
    %291 = vrot.lane.b32.xlu0 %v86, 72
    %v292 = vpop.permute.xlu0 %291
    %v294 = vsel %vm90, %v290, 0
    %v297 = vsel %vm90, %v292, 0
    %299 = vmatpush.bf16.xpose.msra.mxu0 0
    %300 = vmatpush.bf16.xpose.msra.mxu0 0
    %301 = vmatpush.bf16.xpose.msra.mxu0 0
    %302 = vmatpush.bf16.xpose.msra.mxu0 0
    %303 = vmatpush.bf16.xpose.msra.mxu0 0
    %304 = vmatpush.bf16.xpose.msra.mxu0 0
    %305 = vmatpush.bf16.xpose.msra.mxu0 0
    %306 = vmatpush.bf16.xpose.msra.mxu0 %v297
    %307 = vmatmul.bf16.gmra.mxu0 %v294
    %v308 = vpop.f32.mrf.mxu0
    %v309 = vadd.f32 %v48, %v308
    %v310 = vpop.f32.mrf.mxu0
    %v311 = vadd.f32 %v49, %v310
    %312 = vdwg.mxu0
    %v313 = vsel %vm111, %v309, -inf
    %314 = vmax.xlane.f32.xlu0 %v313
    %v315 = vpop.xlane.xlu0 %314
    %v316 = vsel %vm111, %v311, -inf
    %317 = vmax.xlane.f32.xlu0 %v316
    %v318 = vpop.xlane.xlu0 %317
    %v319 = vsub.f32 %v309, %v315
    %v320 = vsub.f32 %v311, %v318
    %v321 = vmul.f32 %v319, 1.442695
    %v322 = vpow.pop %v321
    %v323 = vmul.f32 %v320, 1.442695
    %v324 = vpow.pop %v323
    %v325 = vsel %vm111, %v322, 0.0
    %326 = vadd.xlane.f32.xlu0 %v325
    %v327 = vpop.xlane.xlu0 %326
    %v328 = vsel %vm111, %v324, 0.0
    %329 = vadd.xlane.f32.xlu0 %v328
    %v330 = vpop.xlane.xlu0 %329
    %v331 = vrcp.pop %v327
    %v332 = vrcp.pop %v330
    %v333 = vmul.f32 %v322, %v331
    %v334 = vmul.f32 %v324, %v332
    %v335 = vpack.c.bf16 %v334, %v333
    %336 = vrot.lane.b32.xlu0 %v86, 40
    %v337 = vpop.permute.xlu0 %336
    %v340 = vsel %vm111, %v335, 0
    %342 = vmatpush.bf16.msra.mxu0 0
    %343 = vmatpush.bf16.msra.mxu0 0
    %344 = vmatpush.bf16.msra.mxu0 0
    %345 = vmatpush.bf16.msra.mxu0 0
    %346 = vmatpush.bf16.msra.mxu0 0
    %347 = vmatpush.bf16.msra.mxu0 0
    %348 = vmatpush.bf16.msra.mxu0 0
    %349 = vmatpush.bf16.msra.mxu0 %v337
    %350 = vmatmul.bf16.gmra.mxu0 %v340
    %v351 = vpop.f32.mrf.mxu0
    %v352 = vadd.f32 0.0, %v351
    %v353 = vpop.f32.mrf.mxu0
    %v354 = vadd.f32 0.0, %v353
    %355 = vdwg.mxu0
    %358 = vrot.lane.b32.xlu0 %v218, 8
    %v359 = vpop.permute.xlu0 %358
    %360 = vrot.lane.b32.xlu0 %v220, 8
    %v361 = vpop.permute.xlu0 %360
    %366 = vrot.lane.b32.xlu0 %v285, 16
    %v367 = vpop.permute.xlu0 %366
    %368 = vrot.lane.b32.xlu0 %v287, 16
    %v369 = vpop.permute.xlu0 %368
    %374 = vrot.lane.b32.xlu0 %v352, 24
    %v375 = vpop.permute.xlu0 %374
    %376 = vrot.lane.b32.xlu0 %v354, 24
    %v377 = vpop.permute.xlu0 %376
    %v380 = vsel %vm90, %v151, %v359
    %v381 = vsel %vm90, %v153, %v361
    %v382 = vsel %vm111, %v380, %v367
    %v383 = vsel %vm111, %v381, %v369
    %vm384 = vcmask 195584
    %v385 = vsel %vm384, %v382, %v375
    %v386 = vsel %vm384, %v383, %v377
    %v387 = vpack.c.bf16 %v386, %v385
    %v388 = vld [vmem:[%s4] sm:$0xf]
    %v389 = vld [vmem:[%s4 + $0x4] sm:$0xf]
    %v390 = vld [vmem:[%s4 + $0x8] sm:$0xf]
    %v391 = vld [vmem:[%s4 + $0xc] sm:$0xf]
    %v392 = vperm.slane %v50, 0
    %v397 = vunpack.c.l.b16 %v388
    %v398 = vunpack.c.l.b16 %v389
    %v399 = vunpack.c.l.b16 %v390
    %v400 = vunpack.c.l.b16 %v391
    %v401 = vpack.c.b16 %v398, %v397
    %v402 = vpack.c.b16 %v400, %v399
    %v406 = vsel %vm68, %v387, 0
    %408 = vmatpush.bf16.msra.mxu0 0
    %409 = vmatpush.bf16.msra.mxu0 0
    %410 = vmatpush.bf16.msra.mxu0 0
    %411 = vmatpush.bf16.msra.mxu0 0
    %412 = vmatpush.bf16.msra.mxu0 0
    %413 = vmatpush.bf16.msra.mxu0 0
    %414 = vmatpush.bf16.msra.mxu0 %v402
    %415 = vmatpush.bf16.msra.mxu0 %v401
    %416 = vmatmul.bf16.gmra.mxu0 %v406
    %v417 = vpop.f32.mrf.mxu0
    %v418 = vadd.f32 %v392, %v417
    %v419 = vpop.f32.mrf.mxu0
    %v420 = vadd.f32 %v392, %v419
    %421 = vdwg.mxu0
    %v422 = vadd.f32 %v418, %v43
    %v423 = vadd.f32 %v420, %v44
    %v424 = vsel %vm68, %v422, 0.0
    %425 = vadd.xlane.f32.xlu0 %v424
    %v426 = vpop.xlane.xlu0 %425
    %v427 = vsel %vm68, %v423, 0.0
    %428 = vadd.xlane.f32.xlu0 %v427
    %v429 = vpop.xlane.xlu0 %428
    %v430 = vrcp.pop 32.0
    %v431 = vmul.f32 32.0, %v430
    %v432 = vsub.f32 1.0, %v431
    %v433 = vmul.f32 %v430, %v432
    %v434 = vadd.f32 %v430, %v433
    %vm435 = vweird.f32 %v430
    %v436 = vsel %vm435, %v430, %v434
    %v437 = vmul.f32 %v426, %v436
    %v438 = vmul.f32 %v429, %v436
    %v439 = vsub.f32 %v422, %v437
    %v440 = vsub.f32 %v423, %v438
    %v441 = vmul.f32 %v439, %v439
    %v442 = vmul.f32 %v440, %v440
    %v443 = vsel %vm68, %v441, 0.0
    %444 = vadd.xlane.f32.xlu0 %v443
    %v445 = vpop.xlane.xlu0 %444
    %v446 = vsel %vm68, %v442, 0.0
    %447 = vadd.xlane.f32.xlu0 %v446
    %v448 = vpop.xlane.xlu0 %447
    %v449 = vmul.f32 %v445, %v436
    %v450 = vmul.f32 %v448, %v436
    %v451 = vadd.f32 %v449, 1e-05
    %v452 = vadd.f32 %v450, 1e-05
    %v453 = vrsqrt.pop %v451
    %v454 = vmul.f32 %v453, %v451
    %v455 = vmul.f32 %v454, %v453
    %v456 = vmul.f32 0.5, %v455
    %v457 = vsub.f32 1.5, %v456
    %v458 = vmul.f32 %v453, %v457
    %vm459 = vweird.f32 %v451
    %vm460 = vweird.f32 %v453
    %vm461 = vmor %vm459, %vm460
    %v462 = vsel %vm461, %v453, %v458
    %v463 = vrsqrt.pop %v452
    %v464 = vmul.f32 %v463, %v452
    %v465 = vmul.f32 %v464, %v463
    %v466 = vmul.f32 0.5, %v465
    %v467 = vsub.f32 1.5, %v466
    %v468 = vmul.f32 %v463, %v467
    %vm469 = vweird.f32 %v452
    %vm470 = vweird.f32 %v463
    %vm471 = vmor %vm469, %vm470
    %v472 = vsel %vm471, %v463, %v468
    %v473 = vmul.f32 %v439, %v462
    %v474 = vmul.f32 %v440, %v472
    %v475 = vperm.slane %v50, 1
    %v476 = vmul.f32 %v473, %v475
    %v477 = vmul.f32 %v474, %v475
    %v478 = vperm.slane %v50, 2
    %v479 = vadd.f32 %v476, %v478
    %v480 = vadd.f32 %v477, %v478
    %v481 = vpack.c.bf16 %v480, %v479
    %v482 = vld [vmem:[%s5] sm:$0xf]
    %v483 = vld [vmem:[%s5 + $0x4] sm:$0xf]
    %v484 = vld [vmem:[%s5 + $0x8] sm:$0xf]
    %v485 = vld [vmem:[%s5 + $0xc] sm:$0xf]
    %v490 = vunpack.c.l.b16 %v482
    %v491 = vunpack.c.l.b16 %v483
    %v492 = vunpack.c.l.b16 %v484
    %v493 = vunpack.c.l.b16 %v485
    %v494 = vpack.c.b16 %v491, %v490
    %v495 = vpack.c.b16 %v493, %v492
    %v499 = vsel %vm68, %v481, 0
    %501 = vmatpush.bf16.msra.mxu0 0
    %502 = vmatpush.bf16.msra.mxu0 0
    %503 = vmatpush.bf16.msra.mxu0 0
    %504 = vmatpush.bf16.msra.mxu0 0
    %505 = vmatpush.bf16.msra.mxu0 0
    %506 = vmatpush.bf16.msra.mxu0 0
    %507 = vmatpush.bf16.msra.mxu0 %v495
    %508 = vmatpush.bf16.msra.mxu0 %v494
    %509 = vmatmul.bf16.gmra.mxu0 %v499
    %v510 = vpop.f32.mrf.mxu0
    %v511 = vadd.f32 0.0, %v510
    %v512 = vpop.f32.mrf.mxu0
    %v513 = vadd.f32 0.0, %v512
    %514 = vdwg.mxu0
    %v515 = vld [vmem:[%s6] sm:$0xf]
    %v516 = vld [vmem:[%s6 + $0x4] sm:$0xf]
    %v517 = vld [vmem:[%s6 + $0x8] sm:$0xf]
    %v518 = vld [vmem:[%s6 + $0xc] sm:$0xf]
    %v519 = vld [vmem:[%s6 + $0x10] sm:$0xf]
    %v520 = vld [vmem:[%s6 + $0x14] sm:$0xf]
    %v521 = vld [vmem:[%s6 + $0x18] sm:$0xf]
    %v522 = vld [vmem:[%s6 + $0x1c] sm:$0xf]
    %v525 = vunpack.c.l.b16 %v46
    %v526 = vunpack.c.l.b16 %v47
    %v527 = vpack.c.b16 %v526, %v525
    %v536 = vunpack.c.l.b16 %v515
    %v537 = vunpack.c.l.b16 %v516
    %v538 = vunpack.c.l.b16 %v517
    %v539 = vunpack.c.l.b16 %v518
    %v540 = vunpack.c.l.b16 %v519
    %v541 = vunpack.c.l.b16 %v520
    %v542 = vunpack.c.l.b16 %v521
    %v543 = vunpack.c.l.b16 %v522
    %v544 = vpack.c.b16 %v537, %v536
    %v545 = vpack.c.b16 %v539, %v538
    %v546 = vpack.c.b16 %v541, %v540
    %v547 = vpack.c.b16 %v543, %v542
    %vm552 = vcmask 523264
    %v554 = vsel %vm552, %v527, 0
    %556 = vmatpush.bf16.msra.mxu0 0
    %557 = vmatpush.bf16.msra.mxu0 0
    %558 = vmatpush.bf16.msra.mxu0 0
    %559 = vmatpush.bf16.msra.mxu0 0
    %560 = vmatpush.bf16.msra.mxu0 %v547
    %561 = vmatpush.bf16.msra.mxu0 %v546
    %562 = vmatpush.bf16.msra.mxu0 %v545
    %563 = vmatpush.bf16.msra.mxu0 %v544
    %564 = vmatmul.bf16.gmra.mxu0 %v554
    %v565 = vpop.f32.mrf.mxu0
    %v566 = vadd.f32 0.0, %v565
    %v567 = vpop.f32.mrf.mxu0
    %v568 = vadd.f32 0.0, %v567
    %569 = vdwg.mxu0
    %v570 = vpack.c.bf16 %v513, %v511
    %v571 = vpack.c.bf16 %v568, %v566
    %574 = vrot.lane.b32.xlu0 %v48, 112
    %v575 = vpop.permute.xlu0 %574
    %576 = vrot.lane.b32.xlu0 %v49, 112
    %v577 = vpop.permute.xlu0 %576
    %v581 = vsel %vm90, %v570, 0
    %v584 = vsel %vm90, %v571, 0
    %586 = vmatpush.bf16.xpose.msra.mxu0 0
    %587 = vmatpush.bf16.xpose.msra.mxu0 0
    %588 = vmatpush.bf16.xpose.msra.mxu0 0
    %589 = vmatpush.bf16.xpose.msra.mxu0 0
    %590 = vmatpush.bf16.xpose.msra.mxu0 0
    %591 = vmatpush.bf16.xpose.msra.mxu0 0
    %592 = vmatpush.bf16.xpose.msra.mxu0 0
    %593 = vmatpush.bf16.xpose.msra.mxu0 %v584
    %594 = vmatmul.bf16.gmra.mxu0 %v581
    %v595 = vpop.f32.mrf.mxu0
    %v596 = vadd.f32 %v575, %v595
    %v597 = vpop.f32.mrf.mxu0
    %v598 = vadd.f32 %v577, %v597
    %599 = vdwg.mxu0
    %v600 = vsel %vm111, %v596, -inf
    %601 = vmax.xlane.f32.xlu0 %v600
    %v602 = vpop.xlane.xlu0 %601
    %v603 = vsel %vm111, %v598, -inf
    %604 = vmax.xlane.f32.xlu0 %v603
    %v605 = vpop.xlane.xlu0 %604
    %v606 = vsub.f32 %v596, %v602
    %v607 = vsub.f32 %v598, %v605
    %v608 = vmul.f32 %v606, 1.442695
    %v609 = vpow.pop %v608
    %v610 = vmul.f32 %v607, 1.442695
    %v611 = vpow.pop %v610
    %v612 = vsel %vm111, %v609, 0.0
    %613 = vadd.xlane.f32.xlu0 %v612
    %v614 = vpop.xlane.xlu0 %613
    %v615 = vsel %vm111, %v611, 0.0
    %616 = vadd.xlane.f32.xlu0 %v615
    %v617 = vpop.xlane.xlu0 %616
    %v618 = vrcp.pop %v614
    %v619 = vrcp.pop %v617
    %v620 = vmul.f32 %v609, %v618
    %v621 = vmul.f32 %v611, %v619
    %v622 = vpack.c.bf16 %v621, %v620
    %624 = vrot.lane.b32.xlu0 %v571, 96
    %v625 = vpop.permute.xlu0 %624
    %v628 = vsel %vm111, %v622, 0
    %630 = vmatpush.bf16.msra.mxu0 0
    %631 = vmatpush.bf16.msra.mxu0 0
    %632 = vmatpush.bf16.msra.mxu0 0
    %633 = vmatpush.bf16.msra.mxu0 0
    %634 = vmatpush.bf16.msra.mxu0 0
    %635 = vmatpush.bf16.msra.mxu0 0
    %636 = vmatpush.bf16.msra.mxu0 0
    %637 = vmatpush.bf16.msra.mxu0 %v625
    %638 = vmatmul.bf16.gmra.mxu0 %v628
    %v639 = vpop.f32.mrf.mxu0
    %v640 = vadd.f32 0.0, %v639
    %v641 = vpop.f32.mrf.mxu0
    %v642 = vadd.f32 0.0, %v641
    %643 = vdwg.mxu0
    %645 = vrot.lane.b32.xlu0 %v570, 120
    %v646 = vpop.permute.xlu0 %645
    %647 = vrot.lane.b32.xlu0 %v571, 120
    %v648 = vpop.permute.xlu0 %647
    %v650 = vsel %vm90, %v646, 0
    %v653 = vsel %vm90, %v648, 0
    %655 = vmatpush.bf16.xpose.msra.mxu0 0
    %656 = vmatpush.bf16.xpose.msra.mxu0 0
    %657 = vmatpush.bf16.xpose.msra.mxu0 0
    %658 = vmatpush.bf16.xpose.msra.mxu0 0
    %659 = vmatpush.bf16.xpose.msra.mxu0 0
    %660 = vmatpush.bf16.xpose.msra.mxu0 0
    %661 = vmatpush.bf16.xpose.msra.mxu0 0
    %662 = vmatpush.bf16.xpose.msra.mxu0 %v653
    %663 = vmatmul.bf16.gmra.mxu0 %v650
    %v664 = vpop.f32.mrf.mxu0
    %v665 = vadd.f32 %v575, %v664
    %v666 = vpop.f32.mrf.mxu0
    %v667 = vadd.f32 %v577, %v666
    %668 = vdwg.mxu0
    %v669 = vsel %vm111, %v665, -inf
    %670 = vmax.xlane.f32.xlu0 %v669
    %v671 = vpop.xlane.xlu0 %670
    %v672 = vsel %vm111, %v667, -inf
    %673 = vmax.xlane.f32.xlu0 %v672
    %v674 = vpop.xlane.xlu0 %673
    %v675 = vsub.f32 %v665, %v671
    %v676 = vsub.f32 %v667, %v674
    %v677 = vmul.f32 %v675, 1.442695
    %v678 = vpow.pop %v677
    %v679 = vmul.f32 %v676, 1.442695
    %v680 = vpow.pop %v679
    %v681 = vsel %vm111, %v678, 0.0
    %682 = vadd.xlane.f32.xlu0 %v681
    %v683 = vpop.xlane.xlu0 %682
    %v684 = vsel %vm111, %v680, 0.0
    %685 = vadd.xlane.f32.xlu0 %v684
    %v686 = vpop.xlane.xlu0 %685
    %v687 = vrcp.pop %v683
    %v688 = vrcp.pop %v686
    %v689 = vmul.f32 %v678, %v687
    %v690 = vmul.f32 %v680, %v688
    %v691 = vpack.c.bf16 %v690, %v689
    %692 = vrot.lane.b32.xlu0 %v571, 88
    %v693 = vpop.permute.xlu0 %692
    %v696 = vsel %vm111, %v691, 0
    %698 = vmatpush.bf16.msra.mxu0 0
    %699 = vmatpush.bf16.msra.mxu0 0
    %700 = vmatpush.bf16.msra.mxu0 0
    %701 = vmatpush.bf16.msra.mxu0 0
    %702 = vmatpush.bf16.msra.mxu0 0
    %703 = vmatpush.bf16.msra.mxu0 0
    %704 = vmatpush.bf16.msra.mxu0 0
    %705 = vmatpush.bf16.msra.mxu0 %v693
    %706 = vmatmul.bf16.gmra.mxu0 %v696
    %v707 = vpop.f32.mrf.mxu0
    %v708 = vadd.f32 0.0, %v707
    %v709 = vpop.f32.mrf.mxu0
    %v710 = vadd.f32 0.0, %v709
    %711 = vdwg.mxu0
    %712 = vrot.lane.b32.xlu0 %v570, 112
    %v713 = vpop.permute.xlu0 %712
    %714 = vrot.lane.b32.xlu0 %v571, 112
    %v715 = vpop.permute.xlu0 %714
    %v717 = vsel %vm90, %v713, 0
    %v720 = vsel %vm90, %v715, 0
    %722 = vmatpush.bf16.xpose.msra.mxu0 0
    %723 = vmatpush.bf16.xpose.msra.mxu0 0
    %724 = vmatpush.bf16.xpose.msra.mxu0 0
    %725 = vmatpush.bf16.xpose.msra.mxu0 0
    %726 = vmatpush.bf16.xpose.msra.mxu0 0
    %727 = vmatpush.bf16.xpose.msra.mxu0 0
    %728 = vmatpush.bf16.xpose.msra.mxu0 0
    %729 = vmatpush.bf16.xpose.msra.mxu0 %v720
    %730 = vmatmul.bf16.gmra.mxu0 %v717
    %v731 = vpop.f32.mrf.mxu0
    %v732 = vadd.f32 %v575, %v731
    %v733 = vpop.f32.mrf.mxu0
    %v734 = vadd.f32 %v577, %v733
    %735 = vdwg.mxu0
    %v736 = vsel %vm111, %v732, -inf
    %737 = vmax.xlane.f32.xlu0 %v736
    %v738 = vpop.xlane.xlu0 %737
    %v739 = vsel %vm111, %v734, -inf
    %740 = vmax.xlane.f32.xlu0 %v739
    %v741 = vpop.xlane.xlu0 %740
    %v742 = vsub.f32 %v732, %v738
    %v743 = vsub.f32 %v734, %v741
    %v744 = vmul.f32 %v742, 1.442695
    %v745 = vpow.pop %v744
    %v746 = vmul.f32 %v743, 1.442695
    %v747 = vpow.pop %v746
    %v748 = vsel %vm111, %v745, 0.0
    %749 = vadd.xlane.f32.xlu0 %v748
    %v750 = vpop.xlane.xlu0 %749
    %v751 = vsel %vm111, %v747, 0.0
    %752 = vadd.xlane.f32.xlu0 %v751
    %v753 = vpop.xlane.xlu0 %752
    %v754 = vrcp.pop %v750
    %v755 = vrcp.pop %v753
    %v756 = vmul.f32 %v745, %v754
    %v757 = vmul.f32 %v747, %v755
    %v758 = vpack.c.bf16 %v757, %v756
    %759 = vrot.lane.b32.xlu0 %v571, 80
    %v760 = vpop.permute.xlu0 %759
    %v763 = vsel %vm111, %v758, 0
    %765 = vmatpush.bf16.msra.mxu0 0
    %766 = vmatpush.bf16.msra.mxu0 0
    %767 = vmatpush.bf16.msra.mxu0 0
    %768 = vmatpush.bf16.msra.mxu0 0
    %769 = vmatpush.bf16.msra.mxu0 0
    %770 = vmatpush.bf16.msra.mxu0 0
    %771 = vmatpush.bf16.msra.mxu0 0
    %772 = vmatpush.bf16.msra.mxu0 %v760
    %773 = vmatmul.bf16.gmra.mxu0 %v763
    %v774 = vpop.f32.mrf.mxu0
    %v775 = vadd.f32 0.0, %v774
    %v776 = vpop.f32.mrf.mxu0
    %v777 = vadd.f32 0.0, %v776
    %778 = vdwg.mxu0
    %779 = vrot.lane.b32.xlu0 %v570, 104
    %v780 = vpop.permute.xlu0 %779
    %781 = vrot.lane.b32.xlu0 %v571, 104
    %v782 = vpop.permute.xlu0 %781
    %v784 = vsel %vm90, %v780, 0
    %v787 = vsel %vm90, %v782, 0
    %789 = vmatpush.bf16.xpose.msra.mxu0 0
    %790 = vmatpush.bf16.xpose.msra.mxu0 0
    %791 = vmatpush.bf16.xpose.msra.mxu0 0
    %792 = vmatpush.bf16.xpose.msra.mxu0 0
    %793 = vmatpush.bf16.xpose.msra.mxu0 0
    %794 = vmatpush.bf16.xpose.msra.mxu0 0
    %795 = vmatpush.bf16.xpose.msra.mxu0 0
    %796 = vmatpush.bf16.xpose.msra.mxu0 %v787
    %797 = vmatmul.bf16.gmra.mxu0 %v784
    %v798 = vpop.f32.mrf.mxu0
    %v799 = vadd.f32 %v575, %v798
    %v800 = vpop.f32.mrf.mxu0
    %v801 = vadd.f32 %v577, %v800
    %802 = vdwg.mxu0
    %v803 = vsel %vm111, %v799, -inf
    %804 = vmax.xlane.f32.xlu0 %v803
    %v805 = vpop.xlane.xlu0 %804
    %v806 = vsel %vm111, %v801, -inf
    %807 = vmax.xlane.f32.xlu0 %v806
    %v808 = vpop.xlane.xlu0 %807
    %v809 = vsub.f32 %v799, %v805
    %v810 = vsub.f32 %v801, %v808
    %v811 = vmul.f32 %v809, 1.442695
    %v812 = vpow.pop %v811
    %v813 = vmul.f32 %v810, 1.442695
    %v814 = vpow.pop %v813
    %v815 = vsel %vm111, %v812, 0.0
    %816 = vadd.xlane.f32.xlu0 %v815
    %v817 = vpop.xlane.xlu0 %816
    %v818 = vsel %vm111, %v814, 0.0
    %819 = vadd.xlane.f32.xlu0 %v818
    %v820 = vpop.xlane.xlu0 %819
    %v821 = vrcp.pop %v817
    %v822 = vrcp.pop %v820
    %v823 = vmul.f32 %v812, %v821
    %v824 = vmul.f32 %v814, %v822
    %v825 = vpack.c.bf16 %v824, %v823
    %826 = vrot.lane.b32.xlu0 %v571, 72
    %v827 = vpop.permute.xlu0 %826
    %v830 = vsel %vm111, %v825, 0
    %832 = vmatpush.bf16.msra.mxu0 0
    %833 = vmatpush.bf16.msra.mxu0 0
    %834 = vmatpush.bf16.msra.mxu0 0
    %835 = vmatpush.bf16.msra.mxu0 0
    %836 = vmatpush.bf16.msra.mxu0 0
    %837 = vmatpush.bf16.msra.mxu0 0
    %838 = vmatpush.bf16.msra.mxu0 0
    %839 = vmatpush.bf16.msra.mxu0 %v827
    %840 = vmatmul.bf16.gmra.mxu0 %v830
    %v841 = vpop.f32.mrf.mxu0
    %v842 = vadd.f32 0.0, %v841
    %v843 = vpop.f32.mrf.mxu0
    %v844 = vadd.f32 0.0, %v843
    %845 = vdwg.mxu0
    %848 = vrot.lane.b32.xlu0 %v708, 8
    %v849 = vpop.permute.xlu0 %848
    %850 = vrot.lane.b32.xlu0 %v710, 8
    %v851 = vpop.permute.xlu0 %850
    %856 = vrot.lane.b32.xlu0 %v775, 16
    %v857 = vpop.permute.xlu0 %856
    %858 = vrot.lane.b32.xlu0 %v777, 16
    %v859 = vpop.permute.xlu0 %858
    %864 = vrot.lane.b32.xlu0 %v842, 24
    %v865 = vpop.permute.xlu0 %864
    %866 = vrot.lane.b32.xlu0 %v844, 24
    %v867 = vpop.permute.xlu0 %866
    %v870 = vsel %vm90, %v640, %v849
    %v871 = vsel %vm90, %v642, %v851
    %v872 = vsel %vm111, %v870, %v857
    %v873 = vsel %vm111, %v871, %v859
    %v874 = vsel %vm384, %v872, %v865
    %v875 = vsel %vm384, %v873, %v867
    %v876 = vpack.c.bf16 %v875, %v874
    %v877 = vld [vmem:[%s7] sm:$0xf]
    %v878 = vld [vmem:[%s7 + $0x4] sm:$0xf]
    %v879 = vld [vmem:[%s7 + $0x8] sm:$0xf]
    %v880 = vld [vmem:[%s7 + $0xc] sm:$0xf]
    %v881 = vperm.slane %v50, 3
    %v886 = vunpack.c.l.b16 %v877
    %v887 = vunpack.c.l.b16 %v878
    %v888 = vunpack.c.l.b16 %v879
    %v889 = vunpack.c.l.b16 %v880
    %v890 = vpack.c.b16 %v887, %v886
    %v891 = vpack.c.b16 %v889, %v888
    %v895 = vsel %vm68, %v876, 0
    %897 = vmatpush.bf16.msra.mxu0 0
    %898 = vmatpush.bf16.msra.mxu0 0
    %899 = vmatpush.bf16.msra.mxu0 0
    %900 = vmatpush.bf16.msra.mxu0 0
    %901 = vmatpush.bf16.msra.mxu0 0
    %902 = vmatpush.bf16.msra.mxu0 0
    %903 = vmatpush.bf16.msra.mxu0 %v891
    %904 = vmatpush.bf16.msra.mxu0 %v890
    %905 = vmatmul.bf16.gmra.mxu0 %v895
    %v906 = vpop.f32.mrf.mxu0
    %v907 = vadd.f32 %v881, %v906
    %v908 = vpop.f32.mrf.mxu0
    %v909 = vadd.f32 %v881, %v908
    %910 = vdwg.mxu0
    %v911 = vadd.f32 %v907, %v479
    %v912 = vadd.f32 %v909, %v480
    %v913 = vsel %vm68, %v911, 0.0
    %914 = vadd.xlane.f32.xlu0 %v913
    %v915 = vpop.xlane.xlu0 %914
    %v916 = vsel %vm68, %v912, 0.0
    %917 = vadd.xlane.f32.xlu0 %v916
    %v918 = vpop.xlane.xlu0 %917
    %v919 = vmul.f32 %v915, %v436
    %v920 = vmul.f32 %v918, %v436
    %v921 = vsub.f32 %v911, %v919
    %v922 = vsub.f32 %v912, %v920
    %v923 = vmul.f32 %v921, %v921
    %v924 = vmul.f32 %v922, %v922
    %v925 = vsel %vm68, %v923, 0.0
    %926 = vadd.xlane.f32.xlu0 %v925
    %v927 = vpop.xlane.xlu0 %926
    %v928 = vsel %vm68, %v924, 0.0
    %929 = vadd.xlane.f32.xlu0 %v928
    %v930 = vpop.xlane.xlu0 %929
    %v931 = vmul.f32 %v927, %v436
    %v932 = vmul.f32 %v930, %v436
    %v933 = vadd.f32 %v931, 1e-05
    %v934 = vadd.f32 %v932, 1e-05
    %v935 = vrsqrt.pop %v933
    %v936 = vmul.f32 %v935, %v933
    %v937 = vmul.f32 %v936, %v935
    %v938 = vmul.f32 0.5, %v937
    %v939 = vsub.f32 1.5, %v938
    %v940 = vmul.f32 %v935, %v939
    %vm941 = vweird.f32 %v933
    %vm942 = vweird.f32 %v935
    %vm943 = vmor %vm941, %vm942
    %v944 = vsel %vm943, %v935, %v940
    %v945 = vrsqrt.pop %v934
    %v946 = vmul.f32 %v945, %v934
    %v947 = vmul.f32 %v946, %v945
    %v948 = vmul.f32 0.5, %v947
    %v949 = vsub.f32 1.5, %v948
    %v950 = vmul.f32 %v945, %v949
    %vm951 = vweird.f32 %v934
    %vm952 = vweird.f32 %v945
    %vm953 = vmor %vm951, %vm952
    %v954 = vsel %vm953, %v945, %v950
    %v955 = vmul.f32 %v921, %v944
    %v956 = vmul.f32 %v922, %v954
    %v957 = vperm.slane %v50, 4
    %v958 = vmul.f32 %v955, %v957
    %v959 = vmul.f32 %v956, %v957
    %v960 = vperm.slane %v50, 5
    %v961 = vadd.f32 %v958, %v960
    %v962 = vadd.f32 %v959, %v960
    %v963 = vpack.c.bf16 %v962, %v961
    %v964 = vld [vmem:[%s8] sm:$0xf]
    %v965 = vld [vmem:[%s8 + $0x4] sm:$0xf]
    %v966 = vld [vmem:[%s8 + $0x8] sm:$0xf]
    %v967 = vld [vmem:[%s8 + $0xc] sm:$0xf]
    %v968 = vld [vmem:[%s11] sm:$0x1]
    %v970 = vperm.slane %v968, 0
    %v976 = vunpack.c.l.b16 %v964
    %v977 = vunpack.c.l.b16 %v965
    %v978 = vunpack.c.l.b16 %v966
    %v979 = vunpack.c.l.b16 %v967
    %v980 = vpack.c.b16 %v977, %v976
    %v981 = vpack.c.b16 %v979, %v978
    %v985 = vsel %vm68, %v963, 0
    %987 = vmatpush.bf16.msra.mxu0 0
    %988 = vmatpush.bf16.msra.mxu0 0
    %989 = vmatpush.bf16.msra.mxu0 0
    %990 = vmatpush.bf16.msra.mxu0 0
    %991 = vmatpush.bf16.msra.mxu0 0
    %992 = vmatpush.bf16.msra.mxu0 0
    %993 = vmatpush.bf16.msra.mxu0 %v981
    %994 = vmatpush.bf16.msra.mxu0 %v980
    %995 = vmatmul.bf16.gmra.mxu0 %v985
    %v996 = vpop.f32.mrf.mxu0
    %v997 = vadd.f32 %v970, %v996
    %v998 = vpop.f32.mrf.mxu0
    %v999 = vadd.f32 %v970, %v998
    %1000 = vdwg.mxu0
    %v1001 = vmax.f32 %v997, 0.0
    %v1002 = vmax.f32 %v999, 0.0
    %v1003 = vpack.c.bf16 %v1002, %v1001
    %v1004 = vld [vmem:[%s9] sm:$0xf]
    %v1005 = vld [vmem:[%s9 + $0x4] sm:$0xf]
    %v1006 = vld [vmem:[%s9 + $0x8] sm:$0xf]
    %v1007 = vld [vmem:[%s9 + $0xc] sm:$0xf]
    %v1008 = vld [vmem:[%s9 + $0x10] sm:$0xf]
    %v1009 = vld [vmem:[%s9 + $0x14] sm:$0xf]
    %v1010 = vld [vmem:[%s9 + $0x18] sm:$0xf]
    %v1011 = vld [vmem:[%s9 + $0x1c] sm:$0xf]
    %v1012 = vld [vmem:[%s9 + $0x20] sm:$0xf]
    %v1013 = vld [vmem:[%s9 + $0x24] sm:$0xf]
    %v1014 = vld [vmem:[%s9 + $0x28] sm:$0xf]
    %v1015 = vld [vmem:[%s9 + $0x2c] sm:$0xf]
    %v1016 = vld [vmem:[%s9 + $0x30] sm:$0xf]
    %v1017 = vld [vmem:[%s9 + $0x34] sm:$0xf]
    %v1018 = vld [vmem:[%s9 + $0x38] sm:$0xf]
    %v1019 = vld [vmem:[%s9 + $0x3c] sm:$0xf]
    %v1020 = vperm.slane %v50, 6
    %v1037 = vunpack.c.l.b16 %v1004
    %v1038 = vunpack.c.l.b16 %v1005
    %v1039 = vunpack.c.l.b16 %v1006
    %v1040 = vunpack.c.l.b16 %v1007
    %v1041 = vunpack.c.l.b16 %v1008
    %v1042 = vunpack.c.l.b16 %v1009
    %v1043 = vunpack.c.l.b16 %v1010
    %v1044 = vunpack.c.l.b16 %v1011
    %v1045 = vunpack.c.l.b16 %v1012
    %v1046 = vunpack.c.l.b16 %v1013
    %v1047 = vunpack.c.l.b16 %v1014
    %v1048 = vunpack.c.l.b16 %v1015
    %v1049 = vunpack.c.l.b16 %v1016
    %v1050 = vunpack.c.l.b16 %v1017
    %v1051 = vunpack.c.l.b16 %v1018
    %v1052 = vunpack.c.l.b16 %v1019
    %v1053 = vpack.c.b16 %v1038, %v1037
    %v1054 = vpack.c.b16 %v1040, %v1039
    %v1055 = vpack.c.b16 %v1042, %v1041
    %v1056 = vpack.c.b16 %v1044, %v1043
    %v1057 = vpack.c.b16 %v1046, %v1045
    %v1058 = vpack.c.b16 %v1048, %v1047
    %v1059 = vpack.c.b16 %v1050, %v1049
    %v1060 = vpack.c.b16 %v1052, %v1051
    %1069 = vmatpush.bf16.msra.mxu0 %v1060
    %1070 = vmatpush.bf16.msra.mxu0 %v1059
    %1071 = vmatpush.bf16.msra.mxu0 %v1058
    %1072 = vmatpush.bf16.msra.mxu0 %v1057
    %1073 = vmatpush.bf16.msra.mxu0 %v1056
    %1074 = vmatpush.bf16.msra.mxu0 %v1055
    %1075 = vmatpush.bf16.msra.mxu0 %v1054
    %1076 = vmatpush.bf16.msra.mxu0 %v1053
    %1077 = vmatmul.bf16.gmra.mxu0 %v1003
    %v1078 = vpop.f32.mrf.mxu0
    %v1079 = vadd.f32 %v1020, %v1078
    %v1080 = vpop.f32.mrf.mxu0
    %v1081 = vadd.f32 %v1020, %v1080
    %1082 = vdwg.mxu0
    %v1083 = vadd.f32 %v1079, %v961
    %v1084 = vadd.f32 %v1081, %v962
    %v1085 = vsel %vm68, %v1083, 0.0
    %1086 = vadd.xlane.f32.xlu0 %v1085
    %v1087 = vpop.xlane.xlu0 %1086
    %v1088 = vsel %vm68, %v1084, 0.0
    %1089 = vadd.xlane.f32.xlu0 %v1088
    %v1090 = vpop.xlane.xlu0 %1089
    %v1091 = vmul.f32 %v1087, %v436
    %v1092 = vmul.f32 %v1090, %v436
    %v1093 = vsub.f32 %v1083, %v1091
    %v1094 = vsub.f32 %v1084, %v1092
    %v1095 = vmul.f32 %v1093, %v1093
    %v1096 = vmul.f32 %v1094, %v1094
    %v1097 = vsel %vm68, %v1095, 0.0
    %1098 = vadd.xlane.f32.xlu0 %v1097
    %v1099 = vpop.xlane.xlu0 %1098
    %v1100 = vsel %vm68, %v1096, 0.0
    %1101 = vadd.xlane.f32.xlu0 %v1100
    %v1102 = vpop.xlane.xlu0 %1101
    %v1103 = vmul.f32 %v1099, %v436
    %v1104 = vmul.f32 %v1102, %v436
    %v1105 = vadd.f32 %v1103, 1e-05
    %v1106 = vadd.f32 %v1104, 1e-05
    %v1107 = vrsqrt.pop %v1105
    %v1108 = vmul.f32 %v1107, %v1105
    %v1109 = vmul.f32 %v1108, %v1107
    %v1110 = vmul.f32 0.5, %v1109
    %v1111 = vsub.f32 1.5, %v1110
    %v1112 = vmul.f32 %v1107, %v1111
    %vm1113 = vweird.f32 %v1105
    %vm1114 = vweird.f32 %v1107
    %vm1115 = vmor %vm1113, %vm1114
    %v1116 = vsel %vm1115, %v1107, %v1112
    %v1117 = vrsqrt.pop %v1106
    %v1118 = vmul.f32 %v1117, %v1106
    %v1119 = vmul.f32 %v1118, %v1117
    %v1120 = vmul.f32 0.5, %v1119
    %v1121 = vsub.f32 1.5, %v1120
    %v1122 = vmul.f32 %v1117, %v1121
    %vm1123 = vweird.f32 %v1106
    %vm1124 = vweird.f32 %v1117
    %vm1125 = vmor %vm1123, %vm1124
    %v1126 = vsel %vm1125, %v1117, %v1122
    %v1127 = vmul.f32 %v1093, %v1116
    %v1128 = vmul.f32 %v1094, %v1126
    %v1129 = vperm.slane %v50, 7
    %v1130 = vmul.f32 %v1127, %v1129
    %v1131 = vmul.f32 %v1128, %v1129
    %v1132 = vperm.slane %v51, 0
    %v1133 = vadd.f32 %v1130, %v1132
    %v1134 = vadd.f32 %v1131, %v1132
    %1135 = vst.msk [vmem:[#allocation2] sm:$0xff] %vm68, %v1133
    %1136 = vst.msk [vmem:[#allocation2 + $0x8] sm:$0xff] %vm68, %v1134
    // Predicated region
    $region50: #{decoder_block.1} parent=1 // pred_check
      _
    $region51: #{decoder_block.1} parent=1 // pred_check_branch
      %1138 = sbr.rel (0) target = $region53
    $region52: #{decoder_block.1} parent=1 // pred_region
      %1140 = vsyncadd [#allocation3], 0
      %s1141 = sshll.u32 [#allocation2], 4
      %s1142 = int_to_ptr.vmem [resolvable:$true] %s1141
      %s1143 = sshll.u32 %s12, 4
      %s1144 = int_to_ptr.hbm [resolvable:$true] %s1143
      %1149 = dma.vmem_to_hbm [thread:$0]  %s1142, 256, %s1144, [#allocation3], 128, 128, 8
    $region53: #{decoder_block.1} parent=1 // pred_fallthru
      _
    // Predicated region
    $region54: #{decoder_block.1} parent=1 // pred_check
      _
    $region55: #{decoder_block.1} parent=1 // pred_check_branch
      %1151 = sbr.rel (0) target = $region57
    $region56: #{decoder_block.1} parent=1 // pred_region
      %1153 = dma.done [#allocation3], 256
    $region57: #{decoder_block.1} parent=1 // pred_fallthru
      _
    %1154 = vsyncpa [#allocation3], 1

</llo_original>
